<compile_context>
chip_gen: v6e
topology: v6e:2x2x1
jax: 0.10.0
libtpu: 0.0.40
codegen_flags: <defaults>
</compile_context>

<pallas_src>
import jax
import jax.numpy as jnp
from jax.experimental import pallas as pl
from jax.experimental.pallas import tpu as pltpu


# ------------------------------ fused kernel ------------------------------- #

def _make_fused_rnn_kernel(T, B, hidden_dim, n_layers):
    """Build the fused kernel for a fixed (T, B, H, n_layers).

    Ref order: x_ref, (w_ih_T, w_hh_T, b) * n_layers, fc_w_T, fc_b, out_ref,
               proj_scratch
    """

    def kernel(*refs):
        x_ref = refs[0]
        layer_refs = refs[1:1 + 3 * n_layers]
        fcw_ref = refs[1 + 3 * n_layers]
        fcb_ref = refs[2 + 3 * n_layers]
        out_ref = refs[3 + 3 * n_layers]
        proj_sc = refs[4 + 3 * n_layers]   # (T*B, H): input projection of the
                                           # layer currently being recurred.

        wih = [layer_refs[3 * l + 0] for l in range(n_layers)]
        whh = [layer_refs[3 * l + 1] for l in range(n_layers)]
        bia = [layer_refs[3 * l + 2] for l in range(n_layers)]

        # Layer-0 input projection: one big (T*B, D) x (D, H) MXU matmul.
        proj_sc[...] = (jnp.dot(x_ref[...], wih[0][...],
                                preferred_element_type=jnp.float32)
                        + bia[0][...])

        h = jnp.zeros((B, hidden_dim), jnp.float32)
        for l in range(n_layers):
            whh_l = whh[l][...]                       # (H, H), VMEM-resident
            last = (l == n_layers - 1)
            if not last:
                wih_next = wih[l + 1][...]            # (H, H) next-layer W_ih^T
                b_next = bia[l + 1][...]              # (1, H)

            h = jnp.zeros((B, hidden_dim), jnp.float32)

            # TODO(synk): keep whh_l resident in MXU weight registers across the
            # T steps via pltpu.matmul_push_rhs / matmul_acc_lhs / matmul_pop
            # (MRF on v5e/v6e vs MRB on v7x) once those semantics are pinned down.
            # TODO(synk): for large T switch this unrolled Python loop to
            # lax.fori_loop(..., unroll=<small>) with pl.ds/pl.multiple_of indexing.
            for t in range(T):
                pre = (proj_sc[t * B:(t + 1) * B, :]
                       + jnp.dot(h, whh_l, preferred_element_type=jnp.float32))
                h = jnp.maximum(pre, 0.0)
                if not last:
                    # Interleaved next-layer input projection: this row of
                    # proj_sc is dead once h_t exists, so overwrite in place.
                    # Independent MXU work that fills the slack of the serial
                    # h @ W_hh dependence chain.
                    proj_sc[t * B:(t + 1) * B, :] = (
                        jnp.dot(h, wih_next, preferred_element_type=jnp.float32)
                        + b_next)

        # Final Linear on the last timestep's hidden state (fused, in-kernel).
        out_ref[...] = (jnp.dot(h, fcw_ref[...],
                                preferred_element_type=jnp.float32)
                        + fcb_ref[...]).astype(out_ref.dtype)

    return kernel


# ------------------------------ host wrapper ------------------------------- #

@jax.jit
def rnn_model_img_forward(x, params):
    """x: (B, T, input_dim), batch_first — matches the PyTorch module."""
    B, T, D = x.shape
    rnn_params = params["rnn"]                 # list of (W_ih^T, W_hh^T, b_ih+b_hh)
    n_layers = len(rnn_params)
    H = rnn_params[0][1].shape[0]
    fc_w_T = params["fc_w_T"]                  # (H, O)
    fc_b = params["fc_b"]                      # (1, O)
    O = fc_w_T.shape[1]

    # Time-major, flattened to (T*B, D): layer-0 projection becomes one large
    # matmul inside the kernel.  (4 KiB transpose on host — negligible; fold
    # into upstream data layout if T*B*D ever scales.)
    x_flat = jnp.transpose(x, (1, 0, 2)).reshape(T * B, D).astype(jnp.float32)

    args = [x_flat]
    in_specs = [pl.BlockSpec((T * B, D), lambda i: (0, 0))]
    for (w_ih_T, w_hh_T, b) in rnn_params:
        d_in = w_ih_T.shape[0]
        args += [w_ih_T, w_hh_T, b]
        in_specs += [
            pl.BlockSpec((d_in, H), lambda i: (0, 0)),
            pl.BlockSpec((H, H), lambda i: (0, 0)),
            pl.BlockSpec((1, H), lambda i: (0, 0)),
        ]
    args += [fc_w_T, fc_b]
    in_specs += [
        pl.BlockSpec((H, O), lambda i: (0, 0)),
        pl.BlockSpec((1, O), lambda i: (0, 0)),
    ]

    kernel = _make_fused_rnn_kernel(T, B, H, n_layers)

    # TODO(synk): for large H use bf16 matmul operands (f32 accumulate/relu) on
    # v6e/v7x; once B >= 16 add a leading "parallel" batch grid axis for v7x's
    # two TensorCores and set vmem_limit_bytes against v7x's 64 MiB VMEM;
    # pad H (and O) toward 128 lanes if these dims ever get hot.
    return pl.pallas_call(
        kernel,
        out_shape=jax.ShapeDtypeStruct((B, O), jnp.float32),
        grid=(1,),
        in_specs=in_specs,
        out_specs=pl.BlockSpec((B, O), lambda i: (0, 0)),
        scratch_shapes=[
            pltpu.VMEM((T * B, H), jnp.float32),   # single projection scratch
        ],
        compiler_params=pltpu.CompilerParams(
            dimension_semantics=("arbitrary",)),
    )(*args)


# ------------------------- deterministic parameters ------------------------ #

def init_params(key, input_dim, hidden_dim, layer_dim, output_dim):
    """PyTorch-style init; weights stored pre-transposed and biases pre-fused."""
    params = {"rnn": []}
    bound = 1.0 / float(hidden_dim) ** 0.5
    for l in range(layer_dim):
        in_d = input_dim if l == 0 else hidden_dim
        key, k1, k2, k3, k4 = jax.random.split(key, 5)
        w_ih = jax.random.uniform(k1, (hidden_dim, in_d), jnp.float32, -bound, bound)
        w_hh = jax.random.uniform(k2, (hidden_dim, hidden_dim), jnp.float32, -bound, bound)
        b_ih = jax.random.uniform(k3, (hidden_dim,), jnp.float32, -bound, bound)
        b_hh = jax.random.uniform(k4, (hidden_dim,), jnp.float32, -bound, bound)
        params["rnn"].append(
            (jnp.asarray(w_ih.T, jnp.float32),                      # (D_in, H)
             jnp.asarray(w_hh.T, jnp.float32),                      # (H, H)
             (b_ih + b_hh).reshape(1, hidden_dim).astype(jnp.float32)))
    key, k5, k6 = jax.random.split(key, 3)
    fc_w = jax.random.uniform(k5, (output_dim, hidden_dim), jnp.float32, -bound, bound)
    fc_b = jax.random.uniform(k6, (output_dim,), jnp.float32, -bound, bound)
    params["fc_w_T"] = jnp.asarray(fc_w.T, jnp.float32)             # (H, O)
    params["fc_b"] = fc_b.reshape(1, output_dim).astype(jnp.float32)
    return params


# -------------------------- pure-JAX reference check ------------------------ #

def reference_forward(x, params):
    seq = jnp.transpose(x, (1, 0, 2)).astype(jnp.float32)   # (T, B, D)
    for (w_ih_T, w_hh_T, b) in params["rnn"]:
        T, B, _ = seq.shape
        H = w_hh_T.shape[0]
        h = jnp.zeros((B, H), jnp.float32)
        outs = []
        for t in range(T):
            h = jax.nn.relu(seq[t] @ w_ih_T + h @ w_hh_T + b)
            outs.append(h)
        seq = jnp.stack(outs, axis=0)
    return seq[-1] @ params["fc_w_T"] + params["fc_b"]


# ----------------------------------- main ----------------------------------- #

if __name__ == "__main__":
    B, T = 8, 8               # batch (sublane-aligned), timesteps (e.g. image rows)
    input_dim = 16            # features per timestep (e.g. image row width)
    hidden_dim = 32
    layer_dim = 2
    output_dim = 10

    key = jax.random.PRNGKey(0)
    key, kx = jax.random.split(key)
    x = jax.random.normal(kx, (B, T, input_dim), jnp.float32)

    params = init_params(key, input_dim, hidden_dim, layer_dim, output_dim)

    out = rnn_model_img_forward(x, params)
    out = jax.block_until_ready(out)

    ref = reference_forward(x, params)
    assert out.shape == (B, output_dim)
    assert jnp.allclose(out, ref, atol=1e-4, rtol=1e-4), "mismatch vs reference"

    print("KERNEL_OK")
</pallas_src>

<mosaic_0001>
module attributes {stable_mosaic.version = 11 : i64} {
  func.func @kernel(%arg0: i32, %arg1: memref<64x16xf32, #tpu.memory_space<vmem>>, %arg2: memref<16x32xf32, #tpu.memory_space<vmem>>, %arg3: memref<32x32xf32, #tpu.memory_space<vmem>>, %arg4: memref<1x32xf32, #tpu.memory_space<vmem>>, %arg5: memref<32x32xf32, #tpu.memory_space<vmem>>, %arg6: memref<32x32xf32, #tpu.memory_space<vmem>>, %arg7: memref<1x32xf32, #tpu.memory_space<vmem>>, %arg8: memref<32x10xf32, #tpu.memory_space<vmem>>, %arg9: memref<1x10xf32, #tpu.memory_space<vmem>>, %arg10: memref<8x10xf32, #tpu.memory_space<vmem>>, %arg11: memref<64x32xf32, #tpu.memory_space<vmem>>) attributes {dimension_semantics = [#tpu.dimension_semantics<arbitrary>], iteration_bounds = array<i64: 1>, scalar_prefetch = 0 : i64, scratch_operands = 1 : i64, tpu.core_type = #tpu.core_type<tc>, window_params = [{pipeline_mode = #tpu.pipeline_mode<synchronous>, transform_indices = @transform_0, window_bounds = array<i64: 64, 16>}, {pipeline_mode = #tpu.pipeline_mode<synchronous>, transform_indices = @transform_1, window_bounds = array<i64: 16, 32>}, {pipeline_mode = #tpu.pipeline_mode<synchronous>, transform_indices = @transform_2, window_bounds = array<i64: 32, 32>}, {pipeline_mode = #tpu.pipeline_mode<synchronous>, transform_indices = @transform_3, window_bounds = array<i64: 1, 32>}, {pipeline_mode = #tpu.pipeline_mode<synchronous>, transform_indices = @transform_4, window_bounds = array<i64: 32, 32>}, {pipeline_mode = #tpu.pipeline_mode<synchronous>, transform_indices = @transform_5, window_bounds = array<i64: 32, 32>}, {pipeline_mode = #tpu.pipeline_mode<synchronous>, transform_indices = @transform_6, window_bounds = array<i64: 1, 32>}, {pipeline_mode = #tpu.pipeline_mode<synchronous>, transform_indices = @transform_7, window_bounds = array<i64: 32, 10>}, {pipeline_mode = #tpu.pipeline_mode<synchronous>, transform_indices = @transform_8, window_bounds = array<i64: 1, 10>}, {pipeline_mode = #tpu.pipeline_mode<synchronous>, transform_indices = @transform_9, window_bounds = array<i64: 8, 10>}]} {
    %c0 = arith.constant 0 : index
    %c0_0 = arith.constant 0 : index
    %0 = vector.load %arg1[%c0, %c0_0] : memref<64x16xf32, #tpu.memory_space<vmem>>, vector<64x16xf32>
    %c0_1 = arith.constant 0 : index
    %c0_2 = arith.constant 0 : index
    %1 = vector.load %arg2[%c0_1, %c0_2] : memref<16x32xf32, #tpu.memory_space<vmem>>, vector<16x32xf32>
    %cst = arith.constant dense<0.000000e+00> : vector<64x32xf32>
    %2 = tpu.matmul %0, %1, %cst {dimension_numbers = #tpu.dot_dimension_numbers<[1], [0], [0], [1], [0, 0, 1, 1], [], []>} : vector<64x16xf32>, vector<16x32xf32>, vector<64x32xf32> -> vector<64x32xf32>
    %c0_3 = arith.constant 0 : index
    %c0_4 = arith.constant 0 : index
    %3 = vector.load %arg4[%c0_3, %c0_4] : memref<1x32xf32, #tpu.memory_space<vmem>>, vector<1x32xf32>
    %4 = vector.broadcast %3 : vector<1x32xf32> to vector<64x32xf32>
    %5 = arith.addf %2, %4 : vector<64x32xf32>
    %c0_5 = arith.constant 0 : index
    %c0_6 = arith.constant 0 : index
    %6 = vector.load %arg11[%c0_5, %c0_6] : memref<64x32xf32, #tpu.memory_space<vmem>>, vector<64x32xf32>
    tpu.vector_store %arg11[%c0_5, %c0_6], %5 {strides = array<i32>} : memref<64x32xf32, #tpu.memory_space<vmem>>, vector<64x32xf32>,
    %c0_7 = arith.constant 0 : index
    %c0_8 = arith.constant 0 : index
    %7 = vector.load %arg3[%c0_7, %c0_8] : memref<32x32xf32, #tpu.memory_space<vmem>>, vector<32x32xf32>
    %c0_9 = arith.constant 0 : index
    %c0_10 = arith.constant 0 : index
    %8 = vector.load %arg5[%c0_9, %c0_10] : memref<32x32xf32, #tpu.memory_space<vmem>>, vector<32x32xf32>
    %c0_11 = arith.constant 0 : index
    %c0_12 = arith.constant 0 : index
    %9 = vector.load %arg7[%c0_11, %c0_12] : memref<1x32xf32, #tpu.memory_space<vmem>>, vector<1x32xf32>
    %cst_13 = arith.constant 0.000000e+00 : f32
    %10 = vector.broadcast %cst_13 : f32 to vector<8x32xf32>
    %c0_14 = arith.constant 0 : index
    %c0_15 = arith.constant 0 : index
    %11 = vector.load %arg11[%c0_14, %c0_15] : memref<64x32xf32, #tpu.memory_space<vmem>>, vector<8x32xf32>
    %cst_16 = arith.constant dense<0.000000e+00> : vector<8x32xf32>
    %12 = tpu.matmul %10, %7, %cst_16 {dimension_numbers = #tpu.dot_dimension_numbers<[1], [0], [0], [1], [0, 0, 1, 1], [], []>} : vector<8x32xf32>, vector<32x32xf32>, vector<8x32xf32> -> vector<8x32xf32>
    %13 = arith.addf %11, %12 : vector<8x32xf32>
    %cst_17 = arith.constant 0.000000e+00 : f32
    %14 = vector.broadcast %cst_17 : f32 to vector<8x32xf32>
    %15 = arith.maximumf %13, %14 : vector<8x32xf32>
    %cst_18 = arith.constant dense<0.000000e+00> : vector<8x32xf32>
    %16 = tpu.matmul %15, %8, %cst_18 {dimension_numbers = #tpu.dot_dimension_numbers<[1], [0], [0], [1], [0, 0, 1, 1], [], []>} : vector<8x32xf32>, vector<32x32xf32>, vector<8x32xf32> -> vector<8x32xf32>
    %17 = vector.broadcast %9 : vector<1x32xf32> to vector<8x32xf32>
    %18 = arith.addf %16, %17 : vector<8x32xf32>
    %c0_19 = arith.constant 0 : index
    %c0_20 = arith.constant 0 : index
    %19 = vector.load %arg11[%c0_19, %c0_20] : memref<64x32xf32, #tpu.memory_space<vmem>>, vector<8x32xf32>
    tpu.vector_store %arg11[%c0_19, %c0_20], %18 {strides = array<i32>} : memref<64x32xf32, #tpu.memory_space<vmem>>, vector<8x32xf32>,
    %c8 = arith.constant 8 : index
    %c0_21 = arith.constant 0 : index
    %20 = vector.load %arg11[%c8, %c0_21] : memref<64x32xf32, #tpu.memory_space<vmem>>, vector<8x32xf32>
    %cst_22 = arith.constant dense<0.000000e+00> : vector<8x32xf32>
    %21 = tpu.matmul %15, %7, %cst_22 {dimension_numbers = #tpu.dot_dimension_numbers<[1], [0], [0], [1], [0, 0, 1, 1], [], []>} : vector<8x32xf32>, vector<32x32xf32>, vector<8x32xf32> -> vector<8x32xf32>
    %22 = arith.addf %20, %21 : vector<8x32xf32>
    %cst_23 = arith.constant 0.000000e+00 : f32
    %23 = vector.broadcast %cst_23 : f32 to vector<8x32xf32>
    %24 = arith.maximumf %22, %23 : vector<8x32xf32>
    %cst_24 = arith.constant dense<0.000000e+00> : vector<8x32xf32>
    %25 = tpu.matmul %24, %8, %cst_24 {dimension_numbers = #tpu.dot_dimension_numbers<[1], [0], [0], [1], [0, 0, 1, 1], [], []>} : vector<8x32xf32>, vector<32x32xf32>, vector<8x32xf32> -> vector<8x32xf32>
    %26 = vector.broadcast %9 : vector<1x32xf32> to vector<8x32xf32>
    %27 = arith.addf %25, %26 : vector<8x32xf32>
    %c8_25 = arith.constant 8 : index
    %c0_26 = arith.constant 0 : index
    %28 = vector.load %arg11[%c8_25, %c0_26] : memref<64x32xf32, #tpu.memory_space<vmem>>, vector<8x32xf32>
    tpu.vector_store %arg11[%c8_25, %c0_26], %27 {strides = array<i32>} : memref<64x32xf32, #tpu.memory_space<vmem>>, vector<8x32xf32>,
    %c16 = arith.constant 16 : index
    %c0_27 = arith.constant 0 : index
    %29 = vector.load %arg11[%c16, %c0_27] : memref<64x32xf32, #tpu.memory_space<vmem>>, vector<8x32xf32>
    %cst_28 = arith.constant dense<0.000000e+00> : vector<8x32xf32>
    %30 = tpu.matmul %24, %7, %cst_28 {dimension_numbers = #tpu.dot_dimension_numbers<[1], [0], [0], [1], [0, 0, 1, 1], [], []>} : vector<8x32xf32>, vector<32x32xf32>, vector<8x32xf32> -> vector<8x32xf32>
    %31 = arith.addf %29, %30 : vector<8x32xf32>
    %cst_29 = arith.constant 0.000000e+00 : f32
    %32 = vector.broadcast %cst_29 : f32 to vector<8x32xf32>
    %33 = arith.maximumf %31, %32 : vector<8x32xf32>
    %cst_30 = arith.constant dense<0.000000e+00> : vector<8x32xf32>
    %34 = tpu.matmul %33, %8, %cst_30 {dimension_numbers = #tpu.dot_dimension_numbers<[1], [0], [0], [1], [0, 0, 1, 1], [], []>} : vector<8x32xf32>, vector<32x32xf32>, vector<8x32xf32> -> vector<8x32xf32>
    %35 = vector.broadcast %9 : vector<1x32xf32> to vector<8x32xf32>
    %36 = arith.addf %34, %35 : vector<8x32xf32>
    %c16_31 = arith.constant 16 : index
    %c0_32 = arith.constant 0 : index
    %37 = vector.load %arg11[%c16_31, %c0_32] : memref<64x32xf32, #tpu.memory_space<vmem>>, vector<8x32xf32>
    tpu.vector_store %arg11[%c16_31, %c0_32], %36 {strides = array<i32>} : memref<64x32xf32, #tpu.memory_space<vmem>>, vector<8x32xf32>,
    %c24 = arith.constant 24 : index
    %c0_33 = arith.constant 0 : index
    %38 = vector.load %arg11[%c24, %c0_33] : memref<64x32xf32, #tpu.memory_space<vmem>>, vector<8x32xf32>
    %cst_34 = arith.constant dense<0.000000e+00> : vector<8x32xf32>
    %39 = tpu.matmul %33, %7, %cst_34 {dimension_numbers = #tpu.dot_dimension_numbers<[1], [0], [0], [1], [0, 0, 1, 1], [], []>} : vector<8x32xf32>, vector<32x32xf32>, vector<8x32xf32> -> vector<8x32xf32>
    %40 = arith.addf %38, %39 : vector<8x32xf32>
    %cst_35 = arith.constant 0.000000e+00 : f32
    %41 = vector.broadcast %cst_35 : f32 to vector<8x32xf32>
    %42 = arith.maximumf %40, %41 : vector<8x32xf32>
    %cst_36 = arith.constant dense<0.000000e+00> : vector<8x32xf32>
    %43 = tpu.matmul %42, %8, %cst_36 {dimension_numbers = #tpu.dot_dimension_numbers<[1], [0], [0], [1], [0, 0, 1, 1], [], []>} : vector<8x32xf32>, vector<32x32xf32>, vector<8x32xf32> -> vector<8x32xf32>
    %44 = vector.broadcast %9 : vector<1x32xf32> to vector<8x32xf32>
    %45 = arith.addf %43, %44 : vector<8x32xf32>
    %c24_37 = arith.constant 24 : index
    %c0_38 = arith.constant 0 : index
    %46 = vector.load %arg11[%c24_37, %c0_38] : memref<64x32xf32, #tpu.memory_space<vmem>>, vector<8x32xf32>
    tpu.vector_store %arg11[%c24_37, %c0_38], %45 {strides = array<i32>} : memref<64x32xf32, #tpu.memory_space<vmem>>, vector<8x32xf32>,
    %c32 = arith.constant 32 : index
    %c0_39 = arith.constant 0 : index
    %47 = vector.load %arg11[%c32, %c0_39] : memref<64x32xf32, #tpu.memory_space<vmem>>, vector<8x32xf32>
    %cst_40 = arith.constant dense<0.000000e+00> : vector<8x32xf32>
    %48 = tpu.matmul %42, %7, %cst_40 {dimension_numbers = #tpu.dot_dimension_numbers<[1], [0], [0], [1], [0, 0, 1, 1], [], []>} : vector<8x32xf32>, vector<32x32xf32>, vector<8x32xf32> -> vector<8x32xf32>
    %49 = arith.addf %47, %48 : vector<8x32xf32>
    %cst_41 = arith.constant 0.000000e+00 : f32
    %50 = vector.broadcast %cst_41 : f32 to vector<8x32xf32>
    %51 = arith.maximumf %49, %50 : vector<8x32xf32>
    %cst_42 = arith.constant dense<0.000000e+00> : vector<8x32xf32>
    %52 = tpu.matmul %51, %8, %cst_42 {dimension_numbers = #tpu.dot_dimension_numbers<[1], [0], [0], [1], [0, 0, 1, 1], [], []>} : vector<8x32xf32>, vector<32x32xf32>, vector<8x32xf32> -> vector<8x32xf32>
    %53 = vector.broadcast %9 : vector<1x32xf32> to vector<8x32xf32>
    %54 = arith.addf %52, %53 : vector<8x32xf32>
    %c32_43 = arith.constant 32 : index
    %c0_44 = arith.constant 0 : index
    %55 = vector.load %arg11[%c32_43, %c0_44] : memref<64x32xf32, #tpu.memory_space<vmem>>, vector<8x32xf32>
    tpu.vector_store %arg11[%c32_43, %c0_44], %54 {strides = array<i32>} : memref<64x32xf32, #tpu.memory_space<vmem>>, vector<8x32xf32>,
    %c40 = arith.constant 40 : index
    %c0_45 = arith.constant 0 : index
    %56 = vector.load %arg11[%c40, %c0_45] : memref<64x32xf32, #tpu.memory_space<vmem>>, vector<8x32xf32>
    %cst_46 = arith.constant dense<0.000000e+00> : vector<8x32xf32>
    %57 = tpu.matmul %51, %7, %cst_46 {dimension_numbers = #tpu.dot_dimension_numbers<[1], [0], [0], [1], [0, 0, 1, 1], [], []>} : vector<8x32xf32>, vector<32x32xf32>, vector<8x32xf32> -> vector<8x32xf32>
    %58 = arith.addf %56, %57 : vector<8x32xf32>
    %cst_47 = arith.constant 0.000000e+00 : f32
    %59 = vector.broadcast %cst_47 : f32 to vector<8x32xf32>
    %60 = arith.maximumf %58, %59 : vector<8x32xf32>
    %cst_48 = arith.constant dense<0.000000e+00> : vector<8x32xf32>
    %61 = tpu.matmul %60, %8, %cst_48 {dimension_numbers = #tpu.dot_dimension_numbers<[1], [0], [0], [1], [0, 0, 1, 1], [], []>} : vector<8x32xf32>, vector<32x32xf32>, vector<8x32xf32> -> vector<8x32xf32>
    %62 = vector.broadcast %9 : vector<1x32xf32> to vector<8x32xf32>
    %63 = arith.addf %61, %62 : vector<8x32xf32>
    %c40_49 = arith.constant 40 : index
    %c0_50 = arith.constant 0 : index
    %64 = vector.load %arg11[%c40_49, %c0_50] : memref<64x32xf32, #tpu.memory_space<vmem>>, vector<8x32xf32>
    tpu.vector_store %arg11[%c40_49, %c0_50], %63 {strides = array<i32>} : memref<64x32xf32, #tpu.memory_space<vmem>>, vector<8x32xf32>,
    %c48 = arith.constant 48 : index
    %c0_51 = arith.constant 0 : index
    %65 = vector.load %arg11[%c48, %c0_51] : memref<64x32xf32, #tpu.memory_space<vmem>>, vector<8x32xf32>
    %cst_52 = arith.constant dense<0.000000e+00> : vector<8x32xf32>
    %66 = tpu.matmul %60, %7, %cst_52 {dimension_numbers = #tpu.dot_dimension_numbers<[1], [0], [0], [1], [0, 0, 1, 1], [], []>} : vector<8x32xf32>, vector<32x32xf32>, vector<8x32xf32> -> vector<8x32xf32>
    %67 = arith.addf %65, %66 : vector<8x32xf32>
    %cst_53 = arith.constant 0.000000e+00 : f32
    %68 = vector.broadcast %cst_53 : f32 to vector<8x32xf32>
    %69 = arith.maximumf %67, %68 : vector<8x32xf32>
    %cst_54 = arith.constant dense<0.000000e+00> : vector<8x32xf32>
    %70 = tpu.matmul %69, %8, %cst_54 {dimension_numbers = #tpu.dot_dimension_numbers<[1], [0], [0], [1], [0, 0, 1, 1], [], []>} : vector<8x32xf32>, vector<32x32xf32>, vector<8x32xf32> -> vector<8x32xf32>
    %71 = vector.broadcast %9 : vector<1x32xf32> to vector<8x32xf32>
    %72 = arith.addf %70, %71 : vector<8x32xf32>
    %c48_55 = arith.constant 48 : index
    %c0_56 = arith.constant 0 : index
    %73 = vector.load %arg11[%c48_55, %c0_56] : memref<64x32xf32, #tpu.memory_space<vmem>>, vector<8x32xf32>
    tpu.vector_store %arg11[%c48_55, %c0_56], %72 {strides = array<i32>} : memref<64x32xf32, #tpu.memory_space<vmem>>, vector<8x32xf32>,
    %c56 = arith.constant 56 : index
    %c0_57 = arith.constant 0 : index
    %74 = vector.load %arg11[%c56, %c0_57] : memref<64x32xf32, #tpu.memory_space<vmem>>, vector<8x32xf32>
    %cst_58 = arith.constant dense<0.000000e+00> : vector<8x32xf32>
    %75 = tpu.matmul %69, %7, %cst_58 {dimension_numbers = #tpu.dot_dimension_numbers<[1], [0], [0], [1], [0, 0, 1, 1], [], []>} : vector<8x32xf32>, vector<32x32xf32>, vector<8x32xf32> -> vector<8x32xf32>
    %76 = arith.addf %74, %75 : vector<8x32xf32>
    %cst_59 = arith.constant 0.000000e+00 : f32
    %77 = vector.broadcast %cst_59 : f32 to vector<8x32xf32>
    %78 = arith.maximumf %76, %77 : vector<8x32xf32>
    %cst_60 = arith.constant dense<0.000000e+00> : vector<8x32xf32>
    %79 = tpu.matmul %78, %8, %cst_60 {dimension_numbers = #tpu.dot_dimension_numbers<[1], [0], [0], [1], [0, 0, 1, 1], [], []>} : vector<8x32xf32>, vector<32x32xf32>, vector<8x32xf32> -> vector<8x32xf32>
    %80 = vector.broadcast %9 : vector<1x32xf32> to vector<8x32xf32>
    %81 = arith.addf %79, %80 : vector<8x32xf32>
    %c56_61 = arith.constant 56 : index
    %c0_62 = arith.constant 0 : index
    %82 = vector.load %arg11[%c56_61, %c0_62] : memref<64x32xf32, #tpu.memory_space<vmem>>, vector<8x32xf32>
    tpu.vector_store %arg11[%c56_61, %c0_62], %81 {strides = array<i32>} : memref<64x32xf32, #tpu.memory_space<vmem>>, vector<8x32xf32>,
    %c0_63 = arith.constant 0 : index
    %c0_64 = arith.constant 0 : index
    %83 = vector.load %arg6[%c0_63, %c0_64] : memref<32x32xf32, #tpu.memory_space<vmem>>, vector<32x32xf32>
    %cst_65 = arith.constant 0.000000e+00 : f32
    %84 = vector.broadcast %cst_65 : f32 to vector<8x32xf32>
    %c0_66 = arith.constant 0 : index
    %c0_67 = arith.constant 0 : index
    %85 = vector.load %arg11[%c0_66, %c0_67] : memref<64x32xf32, #tpu.memory_space<vmem>>, vector<8x32xf32>
    %cst_68 = arith.constant dense<0.000000e+00> : vector<8x32xf32>
    %86 = tpu.matmul %84, %83, %cst_68 {dimension_numbers = #tpu.dot_dimension_numbers<[1], [0], [0], [1], [0, 0, 1, 1], [], []>} : vector<8x32xf32>, vector<32x32xf32>, vector<8x32xf32> -> vector<8x32xf32>
    %87 = arith.addf %85, %86 : vector<8x32xf32>
    %cst_69 = arith.constant 0.000000e+00 : f32
    %88 = vector.broadcast %cst_69 : f32 to vector<8x32xf32>
    %89 = arith.maximumf %87, %88 : vector<8x32xf32>
    %c8_70 = arith.constant 8 : index
    %c0_71 = arith.constant 0 : index
    %90 = vector.load %arg11[%c8_70, %c0_71] : memref<64x32xf32, #tpu.memory_space<vmem>>, vector<8x32xf32>
    %cst_72 = arith.constant dense<0.000000e+00> : vector<8x32xf32>
    %91 = tpu.matmul %89, %83, %cst_72 {dimension_numbers = #tpu.dot_dimension_numbers<[1], [0], [0], [1], [0, 0, 1, 1], [], []>} : vector<8x32xf32>, vector<32x32xf32>, vector<8x32xf32> -> vector<8x32xf32>
    %92 = arith.addf %90, %91 : vector<8x32xf32>
    %cst_73 = arith.constant 0.000000e+00 : f32
    %93 = vector.broadcast %cst_73 : f32 to vector<8x32xf32>
    %94 = arith.maximumf %92, %93 : vector<8x32xf32>
    %c16_74 = arith.constant 16 : index
    %c0_75 = arith.constant 0 : index
    %95 = vector.load %arg11[%c16_74, %c0_75] : memref<64x32xf32, #tpu.memory_space<vmem>>, vector<8x32xf32>
    %cst_76 = arith.constant dense<0.000000e+00> : vector<8x32xf32>
    %96 = tpu.matmul %94, %83, %cst_76 {dimension_numbers = #tpu.dot_dimension_numbers<[1], [0], [0], [1], [0, 0, 1, 1], [], []>} : vector<8x32xf32>, vector<32x32xf32>, vector<8x32xf32> -> vector<8x32xf32>
    %97 = arith.addf %95, %96 : vector<8x32xf32>
    %cst_77 = arith.constant 0.000000e+00 : f32
    %98 = vector.broadcast %cst_77 : f32 to vector<8x32xf32>
    %99 = arith.maximumf %97, %98 : vector<8x32xf32>
    %c24_78 = arith.constant 24 : index
    %c0_79 = arith.constant 0 : index
    %100 = vector.load %arg11[%c24_78, %c0_79] : memref<64x32xf32, #tpu.memory_space<vmem>>, vector<8x32xf32>
    %cst_80 = arith.constant dense<0.000000e+00> : vector<8x32xf32>
    %101 = tpu.matmul %99, %83, %cst_80 {dimension_numbers = #tpu.dot_dimension_numbers<[1], [0], [0], [1], [0, 0, 1, 1], [], []>} : vector<8x32xf32>, vector<32x32xf32>, vector<8x32xf32> -> vector<8x32xf32>
    %102 = arith.addf %100, %101 : vector<8x32xf32>
    %cst_81 = arith.constant 0.000000e+00 : f32
    %103 = vector.broadcast %cst_81 : f32 to vector<8x32xf32>
    %104 = arith.maximumf %102, %103 : vector<8x32xf32>
    %c32_82 = arith.constant 32 : index
    %c0_83 = arith.constant 0 : index
    %105 = vector.load %arg11[%c32_82, %c0_83] : memref<64x32xf32, #tpu.memory_space<vmem>>, vector<8x32xf32>
    %cst_84 = arith.constant dense<0.000000e+00> : vector<8x32xf32>
    %106 = tpu.matmul %104, %83, %cst_84 {dimension_numbers = #tpu.dot_dimension_numbers<[1], [0], [0], [1], [0, 0, 1, 1], [], []>} : vector<8x32xf32>, vector<32x32xf32>, vector<8x32xf32> -> vector<8x32xf32>
    %107 = arith.addf %105, %106 : vector<8x32xf32>
    %cst_85 = arith.constant 0.000000e+00 : f32
    %108 = vector.broadcast %cst_85 : f32 to vector<8x32xf32>
    %109 = arith.maximumf %107, %108 : vector<8x32xf32>
    %c40_86 = arith.constant 40 : index
    %c0_87 = arith.constant 0 : index
    %110 = vector.load %arg11[%c40_86, %c0_87] : memref<64x32xf32, #tpu.memory_space<vmem>>, vector<8x32xf32>
    %cst_88 = arith.constant dense<0.000000e+00> : vector<8x32xf32>
    %111 = tpu.matmul %109, %83, %cst_88 {dimension_numbers = #tpu.dot_dimension_numbers<[1], [0], [0], [1], [0, 0, 1, 1], [], []>} : vector<8x32xf32>, vector<32x32xf32>, vector<8x32xf32> -> vector<8x32xf32>
    %112 = arith.addf %110, %111 : vector<8x32xf32>
    %cst_89 = arith.constant 0.000000e+00 : f32
    %113 = vector.broadcast %cst_89 : f32 to vector<8x32xf32>
    %114 = arith.maximumf %112, %113 : vector<8x32xf32>
    %c48_90 = arith.constant 48 : index
    %c0_91 = arith.constant 0 : index
    %115 = vector.load %arg11[%c48_90, %c0_91] : memref<64x32xf32, #tpu.memory_space<vmem>>, vector<8x32xf32>
    %cst_92 = arith.constant dense<0.000000e+00> : vector<8x32xf32>
    %116 = tpu.matmul %114, %83, %cst_92 {dimension_numbers = #tpu.dot_dimension_numbers<[1], [0], [0], [1], [0, 0, 1, 1], [], []>} : vector<8x32xf32>, vector<32x32xf32>, vector<8x32xf32> -> vector<8x32xf32>
    %117 = arith.addf %115, %116 : vector<8x32xf32>
    %cst_93 = arith.constant 0.000000e+00 : f32
    %118 = vector.broadcast %cst_93 : f32 to vector<8x32xf32>
    %119 = arith.maximumf %117, %118 : vector<8x32xf32>
    %c56_94 = arith.constant 56 : index
    %c0_95 = arith.constant 0 : index
    %120 = vector.load %arg11[%c56_94, %c0_95] : memref<64x32xf32, #tpu.memory_space<vmem>>, vector<8x32xf32>
    %cst_96 = arith.constant dense<0.000000e+00> : vector<8x32xf32>
    %121 = tpu.matmul %119, %83, %cst_96 {dimension_numbers = #tpu.dot_dimension_numbers<[1], [0], [0], [1], [0, 0, 1, 1], [], []>} : vector<8x32xf32>, vector<32x32xf32>, vector<8x32xf32> -> vector<8x32xf32>
    %122 = arith.addf %120, %121 : vector<8x32xf32>
    %cst_97 = arith.constant 0.000000e+00 : f32
    %123 = vector.broadcast %cst_97 : f32 to vector<8x32xf32>
    %124 = arith.maximumf %122, %123 : vector<8x32xf32>
    %c0_98 = arith.constant 0 : index
    %c0_99 = arith.constant 0 : index
    %125 = vector.load %arg8[%c0_98, %c0_99] : memref<32x10xf32, #tpu.memory_space<vmem>>, vector<32x10xf32>
    %cst_100 = arith.constant dense<0.000000e+00> : vector<8x10xf32>
    %126 = tpu.matmul %124, %125, %cst_100 {dimension_numbers = #tpu.dot_dimension_numbers<[1], [0], [0], [1], [0, 0, 1, 1], [], []>} : vector<8x32xf32>, vector<32x10xf32>, vector<8x10xf32> -> vector<8x10xf32>
    %c0_101 = arith.constant 0 : index
    %c0_102 = arith.constant 0 : index
    %127 = vector.load %arg9[%c0_101, %c0_102] : memref<1x10xf32, #tpu.memory_space<vmem>>, vector<1x10xf32>
    %128 = vector.broadcast %127 : vector<1x10xf32> to vector<8x10xf32>
    %129 = arith.addf %126, %128 : vector<8x10xf32>
    %c0_103 = arith.constant 0 : index
    %c0_104 = arith.constant 0 : index
    %130 = vector.load %arg10[%c0_103, %c0_104] : memref<8x10xf32, #tpu.memory_space<vmem>>, vector<8x10xf32>
    tpu.vector_store %arg10[%c0_103, %c0_104], %129 {strides = array<i32>} : memref<8x10xf32, #tpu.memory_space<vmem>>, vector<8x10xf32>,
    return
  }
  func.func @transform_0(%arg0: i32) -> (i32, i32) {
    %c0_i32 = arith.constant 0 : i32
    %c0_i32_0 = arith.constant 0 : i32
    %c0_i32_1 = arith.constant 0 : i32
    return %c0_i32, %c0_i32_0 : i32, i32
  }
  func.func @transform_1(%arg0: i32) -> (i32, i32) {
    %c0_i32 = arith.constant 0 : i32
    %c0_i32_0 = arith.constant 0 : i32
    %c0_i32_1 = arith.constant 0 : i32
    return %c0_i32, %c0_i32_0 : i32, i32
  }
  func.func @transform_2(%arg0: i32) -> (i32, i32) {
    %c0_i32 = arith.constant 0 : i32
    %c0_i32_0 = arith.constant 0 : i32
    %c0_i32_1 = arith.constant 0 : i32
    return %c0_i32, %c0_i32_0 : i32, i32
  }
  func.func @transform_3(%arg0: i32) -> (i32, i32) {
    %c0_i32 = arith.constant 0 : i32
    %c0_i32_0 = arith.constant 0 : i32
    %c0_i32_1 = arith.constant 0 : i32
    return %c0_i32, %c0_i32_0 : i32, i32
  }
  func.func @transform_4(%arg0: i32) -> (i32, i32) {
    %c0_i32 = arith.constant 0 : i32
    %c0_i32_0 = arith.constant 0 : i32
    %c0_i32_1 = arith.constant 0 : i32
    return %c0_i32, %c0_i32_0 : i32, i32
  }
  func.func @transform_5(%arg0: i32) -> (i32, i32) {
    %c0_i32 = arith.constant 0 : i32
    %c0_i32_0 = arith.constant 0 : i32
    %c0_i32_1 = arith.constant 0 : i32
    return %c0_i32, %c0_i32_0 : i32, i32
  }
  func.func @transform_6(%arg0: i32) -> (i32, i32) {
    %c0_i32 = arith.constant 0 : i32
    %c0_i32_0 = arith.constant 0 : i32
    %c0_i32_1 = arith.constant 0 : i32
    return %c0_i32, %c0_i32_0 : i32, i32
  }
  func.func @transform_7(%arg0: i32) -> (i32, i32) {
    %c0_i32 = arith.constant 0 : i32
    %c0_i32_0 = arith.constant 0 : i32
    %c0_i32_1 = arith.constant 0 : i32
    return %c0_i32, %c0_i32_0 : i32, i32
  }
  func.func @transform_8(%arg0: i32) -> (i32, i32) {
    %c0_i32 = arith.constant 0 : i32
    %c0_i32_0 = arith.constant 0 : i32
    %c0_i32_1 = arith.constant 0 : i32
    return %c0_i32, %c0_i32_0 : i32, i32
  }
  func.func @transform_9(%arg0: i32) -> (i32, i32) {
    %c0_i32 = arith.constant 0 : i32
    %c0_i32_0 = arith.constant 0 : i32
    %c0_i32_1 = arith.constant 0 : i32
    return %c0_i32, %c0_i32_0 : i32, i32
  }
}

</mosaic_0001>

<llo_original>
// kernel: rnn_model_img_forward.1
$region0: #{rnn_model_img_forward.1}
  #allocation0 [shape = 'u32[]', space=smem, size = 0x4, offset = 0x4, fixed_abs, tag = 'smem constant byte address 0x4 - core index']
  #allocation1 [shape = 'u32[144,128]{1,0:T(1,128)}', space=vmem, size = 0x12000, scoped, tag = 'internal scratch']
  #allocation2 [shape = 'f32[64,32]{1,0:T(8,128)}', space=vmem, size = 0x8000, scoped, tag = 'scratch operand']
  %s0 = inlined_call_operand.vmem [shape: f32[64,16], index: 0, kind: input, shape index: {}]
  %s1 = inlined_call_operand.vmem [shape: f32[16,32], index: 1, kind: input, shape index: {}]
  %s2 = inlined_call_operand.vmem [shape: f32[32,32], index: 2, kind: input, shape index: {}]
  %s3 = inlined_call_operand.vmem [shape: f32[1,32], index: 3, kind: input, shape index: {}]
  %s4 = inlined_call_operand.vmem [shape: f32[32,32], index: 4, kind: input, shape index: {}]
  %s5 = inlined_call_operand.vmem [shape: f32[32,32], index: 5, kind: input, shape index: {}]
  %s6 = inlined_call_operand.vmem [shape: f32[1,32], index: 6, kind: input, shape index: {}]
  %s7 = inlined_call_operand.vmem [shape: f32[32,10], index: 7, kind: input, shape index: {}]
  %s8 = inlined_call_operand.vmem [shape: f32[1,10], index: 8, kind: input, shape index: {}]
  %s9 = inlined_call_operand.hbm [shape: f32[8,10], index: 9, kind: output, shape index: {}]
  %s10 = sld [smem:[#allocation0]]
  $region46: #{rnn_model_img_forward.1} parent=0
    _
  %s12 = ssub.s32 1, %s10
  %s13 = scalar_select 0, %s12, %s10
  $region1: #{rnn_model_img_forward.1} parent=0
    #allocation3 [shape = 'u8[4096]{0}', space=vmem, size = 0x1000, scoped, tag = 'output window, operand 0, single buffered']
    #allocation4 [shape = 's32[1]{0}', space=sflag, size = 0x4, scoped, tag = 'scoped memory for rnn_model_img_forward.1']
    %14 = vsyncpa [#allocation4], 0
    // Predicated region
    $region2: #{rnn_model_img_forward.1} parent=1 // pred_check
      _
    $region3: #{rnn_model_img_forward.1} parent=1 // pred_check_branch
      %16 = sbr.rel (0) target = $region5
    $region4: #{rnn_model_img_forward.1} parent=1 // pred_region
      _
    $region5: #{rnn_model_img_forward.1} parent=1 // pred_fallthru
      _
    // Predicated region
    $region6: #{rnn_model_img_forward.1} parent=1 // pred_check
      _
    $region7: #{rnn_model_img_forward.1} parent=1 // pred_check_branch
      %18 = sbr.rel (0) target = $region9
    $region8: #{rnn_model_img_forward.1} parent=1 // pred_region
      _
    $region9: #{rnn_model_img_forward.1} parent=1 // pred_fallthru
      _
    // Predicated region
    $region10: #{rnn_model_img_forward.1} parent=1 // pred_check
      _
    $region11: #{rnn_model_img_forward.1} parent=1 // pred_check_branch
      %20 = sbr.rel (0) target = $region13
    $region12: #{rnn_model_img_forward.1} parent=1 // pred_region
      _
    $region13: #{rnn_model_img_forward.1} parent=1 // pred_fallthru
      _
    // Predicated region
    $region14: #{rnn_model_img_forward.1} parent=1 // pred_check
      _
    $region15: #{rnn_model_img_forward.1} parent=1 // pred_check_branch
      %22 = sbr.rel (0) target = $region17
    $region16: #{rnn_model_img_forward.1} parent=1 // pred_region
      _
    $region17: #{rnn_model_img_forward.1} parent=1 // pred_fallthru
      _
    // Predicated region
    $region18: #{rnn_model_img_forward.1} parent=1 // pred_check
      _
    $region19: #{rnn_model_img_forward.1} parent=1 // pred_check_branch
      %24 = sbr.rel (0) target = $region21
    $region20: #{rnn_model_img_forward.1} parent=1 // pred_region
      _
    $region21: #{rnn_model_img_forward.1} parent=1 // pred_fallthru
      _
    // Predicated region
    $region22: #{rnn_model_img_forward.1} parent=1 // pred_check
      _
    $region23: #{rnn_model_img_forward.1} parent=1 // pred_check_branch
      %26 = sbr.rel (0) target = $region25
    $region24: #{rnn_model_img_forward.1} parent=1 // pred_region
      _
    $region25: #{rnn_model_img_forward.1} parent=1 // pred_fallthru
      _
    // Predicated region
    $region26: #{rnn_model_img_forward.1} parent=1 // pred_check
      _
    $region27: #{rnn_model_img_forward.1} parent=1 // pred_check_branch
      %28 = sbr.rel (0) target = $region29
    $region28: #{rnn_model_img_forward.1} parent=1 // pred_region
      _
    $region29: #{rnn_model_img_forward.1} parent=1 // pred_fallthru
      _
    // Predicated region
    $region30: #{rnn_model_img_forward.1} parent=1 // pred_check
      _
    $region31: #{rnn_model_img_forward.1} parent=1 // pred_check_branch
      %30 = sbr.rel (0) target = $region33
    $region32: #{rnn_model_img_forward.1} parent=1 // pred_region
      _
    $region33: #{rnn_model_img_forward.1} parent=1 // pred_fallthru
      _
    // Predicated region
    $region34: #{rnn_model_img_forward.1} parent=1 // pred_check
      _
    $region35: #{rnn_model_img_forward.1} parent=1 // pred_check_branch
      %32 = sbr.rel (0) target = $region37
    $region36: #{rnn_model_img_forward.1} parent=1 // pred_region
      _
    $region37: #{rnn_model_img_forward.1} parent=1 // pred_fallthru
      _
    %v33 = vld [vmem:[%s0] sm:$0xff]
    %v34 = vld [vmem:[%s0 + $0x8] sm:$0xff]
    %v35 = vld [vmem:[%s0 + $0x10] sm:$0xff]
    %v36 = vld [vmem:[%s0 + $0x18] sm:$0xff]
    %v37 = vld [vmem:[%s0 + $0x20] sm:$0xff]
    %v38 = vld [vmem:[%s0 + $0x28] sm:$0xff]
    %v39 = vld [vmem:[%s0 + $0x30] sm:$0xff]
    %v40 = vld [vmem:[%s0 + $0x38] sm:$0xff]
    %v41 = vld [vmem:[%s1] sm:$0xff]
    %v42 = vld [vmem:[%s1 + $0x8] sm:$0xff]
    %v43 = vld [vmem:[%s3] sm:$0x1]
    %v45 = vlaneseq
    %v46 = vshrl.u32 %v45, 7
    %v47 = vsub.s32 0, %v46
    %v48 = vrot.slane %v43, %v47
    %vm50 = vcmask 130048
    %v52 = vsel %vm50, %v33, 0
    %v55 = vsel %vm50, %v34, 0
    %v58 = vsel %vm50, %v35, 0
    %v61 = vsel %vm50, %v36, 0
    %v64 = vsel %vm50, %v37, 0
    %v67 = vsel %vm50, %v38, 0
    %v70 = vsel %vm50, %v39, 0
    %v73 = vsel %vm50, %v40, 0
    %75 = vmatprep.subr.mxu0 0.0
    %76 = vmatpush1.msra.mxu0 0.0
    %77 = vmatprep.subr.mxu0 0.0
    %78 = vmatpush1.msra.mxu0 0.0
    %79 = vmatprep.subr.mxu0 0.0
    %80 = vmatpush1.msra.mxu0 0.0
    %81 = vmatprep.subr.mxu0 0.0
    %82 = vmatpush1.msra.mxu0 0.0
    %83 = vmatprep.subr.mxu0 0.0
    %84 = vmatpush1.msra.mxu0 0.0
    %85 = vmatprep.subr.mxu0 0.0
    %86 = vmatpush1.msra.mxu0 0.0
    %87 = vmatprep.subr.mxu0 0.0
    %88 = vmatpush1.msra.mxu0 0.0
    %89 = vmatprep.subr.mxu0 0.0
    %90 = vmatpush1.msra.mxu0 0.0
    %91 = vmatprep.subr.mxu0 0.0
    %92 = vmatpush1.msra.mxu0 0.0
    %93 = vmatprep.subr.mxu0 0.0
    %94 = vmatpush1.msra.mxu0 0.0
    %95 = vmatprep.subr.mxu0 0.0
    %96 = vmatpush1.msra.mxu0 0.0
    %97 = vmatprep.subr.mxu0 0.0
    %98 = vmatpush1.msra.mxu0 0.0
    %99 = vmatprep.subr.mxu0 0.0
    %100 = vmatpush1.msra.mxu0 0.0
    %101 = vmatprep.subr.mxu0 0.0
    %102 = vmatpush1.msra.mxu0 0.0
    %103 = vmatprep.subr.mxu0 0.0
    %104 = vmatpush1.msra.mxu0 %v42
    %105 = vmatprep.subr.mxu0 0.0
    %106 = vmatpush1.msra.mxu0 %v41
    %107 = vmatprep.subr.mxu0 0.0
    %108 = vmatpush2.msra.mxu0 0.0
    %109 = vmatprep.subr.mxu0 0.0
    %110 = vmatpush2.msra.mxu0 0.0
    %111 = vmatprep.subr.mxu0 0.0
    %112 = vmatpush2.msra.mxu0 0.0
    %113 = vmatprep.subr.mxu0 0.0
    %114 = vmatpush2.msra.mxu0 0.0
    %115 = vmatprep.subr.mxu0 0.0
    %116 = vmatpush2.msra.mxu0 0.0
    %117 = vmatprep.subr.mxu0 0.0
    %118 = vmatpush2.msra.mxu0 0.0
    %119 = vmatprep.subr.mxu0 0.0
    %120 = vmatpush2.msra.mxu0 0.0
    %121 = vmatprep.subr.mxu0 0.0
    %122 = vmatpush2.msra.mxu0 0.0
    %123 = vmatprep.subr.mxu0 0.0
    %124 = vmatpush2.msra.mxu0 0.0
    %125 = vmatprep.subr.mxu0 0.0
    %126 = vmatpush2.msra.mxu0 0.0
    %127 = vmatprep.subr.mxu0 0.0
    %128 = vmatpush2.msra.mxu0 0.0
    %129 = vmatprep.subr.mxu0 0.0
    %130 = vmatpush2.msra.mxu0 0.0
    %131 = vmatprep.subr.mxu0 0.0
    %132 = vmatpush2.msra.mxu0 0.0
    %133 = vmatprep.subr.mxu0 0.0
    %134 = vmatpush2.msra.mxu0 0.0
    %135 = vmatprep.subr.mxu0 0.0
    %136 = vmatpush2.msra.mxu0 0.0
    %137 = vmatprep.subr.mxu0 0.0
    %138 = vmatpush2.msra.mxu0 0.0
    %139 = vmatprep.mubr.f32.mxu0 0.0
    %140 = vmatmul.mubr.f32.gmra.mxu0 %v52
    %v141 = vpop.f32.mrf.mxu0
    %v142 = vadd.f32 %v48, %v141
    %v143 = vpop.f32.mrf.mxu0
    %144 = vmatprep.mubr.f32.mxu0 0.0
    %145 = vmatmul.mubr.f32.gmra.mxu0 %v55
    %v146 = vpop.f32.mrf.mxu0
    %v147 = vadd.f32 %v48, %v146
    %v148 = vpop.f32.mrf.mxu0
    %149 = vmatprep.mubr.f32.mxu0 0.0
    %150 = vmatmul.mubr.f32.gmra.mxu0 %v58
    %v151 = vpop.f32.mrf.mxu0
    %v152 = vadd.f32 %v48, %v151
    %v153 = vpop.f32.mrf.mxu0
    %154 = vmatprep.mubr.f32.mxu0 0.0
    %155 = vmatmul.mubr.f32.gmra.mxu0 %v61
    %v156 = vpop.f32.mrf.mxu0
    %v157 = vadd.f32 %v48, %v156
    %v158 = vpop.f32.mrf.mxu0
    %159 = vmatprep.mubr.f32.mxu0 0.0
    %160 = vmatmul.mubr.f32.gmra.mxu0 %v64
    %v161 = vpop.f32.mrf.mxu0
    %v162 = vadd.f32 %v48, %v161
    %v163 = vpop.f32.mrf.mxu0
    %164 = vmatprep.mubr.f32.mxu0 0.0
    %165 = vmatmul.mubr.f32.gmra.mxu0 %v67
    %v166 = vpop.f32.mrf.mxu0
    %v167 = vadd.f32 %v48, %v166
    %v168 = vpop.f32.mrf.mxu0
    %169 = vmatprep.mubr.f32.mxu0 0.0
    %170 = vmatmul.mubr.f32.gmra.mxu0 %v70
    %v171 = vpop.f32.mrf.mxu0
    %v172 = vadd.f32 %v48, %v171
    %v173 = vpop.f32.mrf.mxu0
    %174 = vmatprep.mubr.f32.mxu0 0.0
    %175 = vmatmul.mubr.f32.gmra.mxu0 %v73
    %v176 = vpop.f32.mrf.mxu0
    %v177 = vadd.f32 %v48, %v176
    %v178 = vpop.f32.mrf.mxu0
    %179 = vdwg.mxu0
    %vm180 = vcmask 261120
    %181 = vst.msk [vmem:[#allocation2] sm:$0xff] %vm180, %v142
    %182 = vst.msk [vmem:[#allocation2 + $0x8] sm:$0xff] %vm180, %v147
    %183 = vst.msk [vmem:[#allocation2 + $0x10] sm:$0xff] %vm180, %v152
    %184 = vst.msk [vmem:[#allocation2 + $0x18] sm:$0xff] %vm180, %v157
    %185 = vst.msk [vmem:[#allocation2 + $0x20] sm:$0xff] %vm180, %v162
    %186 = vst.msk [vmem:[#allocation2 + $0x28] sm:$0xff] %vm180, %v167
    %187 = vst.msk [vmem:[#allocation2 + $0x30] sm:$0xff] %vm180, %v172
    %188 = vst.msk [vmem:[#allocation2 + $0x38] sm:$0xff] %vm180, %v177
    %v189 = vld [vmem:[%s2] sm:$0xff]
    %v190 = vld [vmem:[%s2 + $0x8] sm:$0xff]
    %v191 = vld [vmem:[%s2 + $0x10] sm:$0xff]
    %v192 = vld [vmem:[%s2 + $0x18] sm:$0xff]
    %v193 = vld [vmem:[%s4] sm:$0xff]
    %v194 = vld [vmem:[%s4 + $0x8] sm:$0xff]
    %v195 = vld [vmem:[%s4 + $0x10] sm:$0xff]
    %v196 = vld [vmem:[%s4 + $0x18] sm:$0xff]
    %v197 = vld [vmem:[%s6] sm:$0x1]
    %v198 = vld [vmem:[#allocation2] sm:$0xff]
    %v200 = vsel %vm180, 0.0, 0
    %202 = vmatprep.subr.mxu0 0.0
    %203 = vmatpush1.msra.mxu0 0.0
    %204 = vmatprep.subr.mxu0 0.0
    %205 = vmatpush1.msra.mxu0 0.0
    %206 = vmatprep.subr.mxu0 0.0
    %207 = vmatpush1.msra.mxu0 0.0
    %208 = vmatprep.subr.mxu0 0.0
    %209 = vmatpush1.msra.mxu0 0.0
    %210 = vmatprep.subr.mxu0 0.0
    %211 = vmatpush1.msra.mxu0 0.0
    %212 = vmatprep.subr.mxu0 0.0
    %213 = vmatpush1.msra.mxu0 0.0
    %214 = vmatprep.subr.mxu0 0.0
    %215 = vmatpush1.msra.mxu0 0.0
    %216 = vmatprep.subr.mxu0 0.0
    %217 = vmatpush1.msra.mxu0 0.0
    %218 = vmatprep.subr.mxu0 0.0
    %219 = vmatpush1.msra.mxu0 0.0
    %220 = vmatprep.subr.mxu0 0.0
    %221 = vmatpush1.msra.mxu0 0.0
    %222 = vmatprep.subr.mxu0 0.0
    %223 = vmatpush1.msra.mxu0 0.0
    %224 = vmatprep.subr.mxu0 0.0
    %225 = vmatpush1.msra.mxu0 0.0
    %226 = vmatprep.subr.mxu0 0.0
    %227 = vmatpush1.msra.mxu0 %v192
    %228 = vmatprep.subr.mxu0 0.0
    %229 = vmatpush1.msra.mxu0 %v191
    %230 = vmatprep.subr.mxu0 0.0
    %231 = vmatpush1.msra.mxu0 %v190
    %232 = vmatprep.subr.mxu0 0.0
    %233 = vmatpush1.msra.mxu0 %v189
    %234 = vmatprep.subr.mxu0 0.0
    %235 = vmatpush2.msra.mxu0 0.0
    %236 = vmatprep.subr.mxu0 0.0
    %237 = vmatpush2.msra.mxu0 0.0
    %238 = vmatprep.subr.mxu0 0.0
    %239 = vmatpush2.msra.mxu0 0.0
    %240 = vmatprep.subr.mxu0 0.0
    %241 = vmatpush2.msra.mxu0 0.0
    %242 = vmatprep.subr.mxu0 0.0
    %243 = vmatpush2.msra.mxu0 0.0
    %244 = vmatprep.subr.mxu0 0.0
    %245 = vmatpush2.msra.mxu0 0.0
    %246 = vmatprep.subr.mxu0 0.0
    %247 = vmatpush2.msra.mxu0 0.0
    %248 = vmatprep.subr.mxu0 0.0
    %249 = vmatpush2.msra.mxu0 0.0
    %250 = vmatprep.subr.mxu0 0.0
    %251 = vmatpush2.msra.mxu0 0.0
    %252 = vmatprep.subr.mxu0 0.0
    %253 = vmatpush2.msra.mxu0 0.0
    %254 = vmatprep.subr.mxu0 0.0
    %255 = vmatpush2.msra.mxu0 0.0
    %256 = vmatprep.subr.mxu0 0.0
    %257 = vmatpush2.msra.mxu0 0.0
    %258 = vmatprep.subr.mxu0 0.0
    %259 = vmatpush2.msra.mxu0 0.0
    %260 = vmatprep.subr.mxu0 0.0
    %261 = vmatpush2.msra.mxu0 0.0
    %262 = vmatprep.subr.mxu0 0.0
    %263 = vmatpush2.msra.mxu0 0.0
    %264 = vmatprep.subr.mxu0 0.0
    %265 = vmatpush2.msra.mxu0 0.0
    %266 = vmatprep.mubr.f32.mxu0 0.0
    %267 = vmatmul.mubr.f32.gmra.mxu0 %v200
    %v268 = vpop.f32.mrf.mxu0
    %v269 = vadd.f32 0.0, %v268
    %v270 = vpop.f32.mrf.mxu0
    %271 = vdwg.mxu0
    %v272 = vadd.f32 %v198, %v269
    %v273 = vmax.f32 %v272, 0.0
    %v275 = vlaneseq
    %v276 = vshrl.u32 %v275, 7
    %v277 = vsub.s32 0, %v276
    %v278 = vrot.slane %v197, %v277
    %v281 = vsel %vm180, %v273, 0
    %283 = vmatprep.subr.mxu0 0.0
    %284 = vmatpush1.msra.mxu0 0.0
    %285 = vmatprep.subr.mxu0 0.0
    %286 = vmatpush1.msra.mxu0 0.0
    %287 = vmatprep.subr.mxu0 0.0
    %288 = vmatpush1.msra.mxu0 0.0
    %289 = vmatprep.subr.mxu0 0.0
    %290 = vmatpush1.msra.mxu0 0.0
    %291 = vmatprep.subr.mxu0 0.0
    %292 = vmatpush1.msra.mxu0 0.0
    %293 = vmatprep.subr.mxu0 0.0
    %294 = vmatpush1.msra.mxu0 0.0
    %295 = vmatprep.subr.mxu0 0.0
    %296 = vmatpush1.msra.mxu0 0.0
    %297 = vmatprep.subr.mxu0 0.0
    %298 = vmatpush1.msra.mxu0 0.0
    %299 = vmatprep.subr.mxu0 0.0
    %300 = vmatpush1.msra.mxu0 0.0
    %301 = vmatprep.subr.mxu0 0.0
    %302 = vmatpush1.msra.mxu0 0.0
    %303 = vmatprep.subr.mxu0 0.0
    %304 = vmatpush1.msra.mxu0 0.0
    %305 = vmatprep.subr.mxu0 0.0
    %306 = vmatpush1.msra.mxu0 0.0
    %307 = vmatprep.subr.mxu0 0.0
    %308 = vmatpush1.msra.mxu0 %v196
    %309 = vmatprep.subr.mxu0 0.0
    %310 = vmatpush1.msra.mxu0 %v195
    %311 = vmatprep.subr.mxu0 0.0
    %312 = vmatpush1.msra.mxu0 %v194
    %313 = vmatprep.subr.mxu0 0.0
    %314 = vmatpush1.msra.mxu0 %v193
    %315 = vmatprep.subr.mxu0 0.0
    %316 = vmatpush2.msra.mxu0 0.0
    %317 = vmatprep.subr.mxu0 0.0
    %318 = vmatpush2.msra.mxu0 0.0
    %319 = vmatprep.subr.mxu0 0.0
    %320 = vmatpush2.msra.mxu0 0.0
    %321 = vmatprep.subr.mxu0 0.0
    %322 = vmatpush2.msra.mxu0 0.0
    %323 = vmatprep.subr.mxu0 0.0
    %324 = vmatpush2.msra.mxu0 0.0
    %325 = vmatprep.subr.mxu0 0.0
    %326 = vmatpush2.msra.mxu0 0.0
    %327 = vmatprep.subr.mxu0 0.0
    %328 = vmatpush2.msra.mxu0 0.0
    %329 = vmatprep.subr.mxu0 0.0
    %330 = vmatpush2.msra.mxu0 0.0
    %331 = vmatprep.subr.mxu0 0.0
    %332 = vmatpush2.msra.mxu0 0.0
    %333 = vmatprep.subr.mxu0 0.0
    %334 = vmatpush2.msra.mxu0 0.0
    %335 = vmatprep.subr.mxu0 0.0
    %336 = vmatpush2.msra.mxu0 0.0
    %337 = vmatprep.subr.mxu0 0.0
    %338 = vmatpush2.msra.mxu0 0.0
    %339 = vmatprep.subr.mxu0 0.0
    %340 = vmatpush2.msra.mxu0 0.0
    %341 = vmatprep.subr.mxu0 0.0
    %342 = vmatpush2.msra.mxu0 0.0
    %343 = vmatprep.subr.mxu0 0.0
    %344 = vmatpush2.msra.mxu0 0.0
    %345 = vmatprep.subr.mxu0 0.0
    %346 = vmatpush2.msra.mxu0 0.0
    %347 = vmatprep.mubr.f32.mxu0 0.0
    %348 = vmatmul.mubr.f32.gmra.mxu0 %v281
    %v349 = vpop.f32.mrf.mxu0
    %v350 = vadd.f32 %v278, %v349
    %v351 = vpop.f32.mrf.mxu0
    %352 = vdwg.mxu0
    %353 = vst.msk [vmem:[#allocation2] sm:$0xff] %vm180, %v350
    %v354 = vld [vmem:[#allocation2 + $0x8] sm:$0xff]
    %355 = vmatprep.subr.mxu0 0.0
    %356 = vmatpush1.msra.mxu0 0.0
    %357 = vmatprep.subr.mxu0 0.0
    %358 = vmatpush1.msra.mxu0 0.0
    %359 = vmatprep.subr.mxu0 0.0
    %360 = vmatpush1.msra.mxu0 0.0
    %361 = vmatprep.subr.mxu0 0.0
    %362 = vmatpush1.msra.mxu0 0.0
    %363 = vmatprep.subr.mxu0 0.0
    %364 = vmatpush1.msra.mxu0 0.0
    %365 = vmatprep.subr.mxu0 0.0
    %366 = vmatpush1.msra.mxu0 0.0
    %367 = vmatprep.subr.mxu0 0.0
    %368 = vmatpush1.msra.mxu0 0.0
    %369 = vmatprep.subr.mxu0 0.0
    %370 = vmatpush1.msra.mxu0 0.0
    %371 = vmatprep.subr.mxu0 0.0
    %372 = vmatpush1.msra.mxu0 0.0
    %373 = vmatprep.subr.mxu0 0.0
    %374 = vmatpush1.msra.mxu0 0.0
    %375 = vmatprep.subr.mxu0 0.0
    %376 = vmatpush1.msra.mxu0 0.0
    %377 = vmatprep.subr.mxu0 0.0
    %378 = vmatpush1.msra.mxu0 0.0
    %379 = vmatprep.subr.mxu0 0.0
    %380 = vmatpush1.msra.mxu0 %v192
    %381 = vmatprep.subr.mxu0 0.0
    %382 = vmatpush1.msra.mxu0 %v191
    %383 = vmatprep.subr.mxu0 0.0
    %384 = vmatpush1.msra.mxu0 %v190
    %385 = vmatprep.subr.mxu0 0.0
    %386 = vmatpush1.msra.mxu0 %v189
    %387 = vmatprep.subr.mxu0 0.0
    %388 = vmatpush2.msra.mxu0 0.0
    %389 = vmatprep.subr.mxu0 0.0
    %390 = vmatpush2.msra.mxu0 0.0
    %391 = vmatprep.subr.mxu0 0.0
    %392 = vmatpush2.msra.mxu0 0.0
    %393 = vmatprep.subr.mxu0 0.0
    %394 = vmatpush2.msra.mxu0 0.0
    %395 = vmatprep.subr.mxu0 0.0
    %396 = vmatpush2.msra.mxu0 0.0
    %397 = vmatprep.subr.mxu0 0.0
    %398 = vmatpush2.msra.mxu0 0.0
    %399 = vmatprep.subr.mxu0 0.0
    %400 = vmatpush2.msra.mxu0 0.0
    %401 = vmatprep.subr.mxu0 0.0
    %402 = vmatpush2.msra.mxu0 0.0
    %403 = vmatprep.subr.mxu0 0.0
    %404 = vmatpush2.msra.mxu0 0.0
    %405 = vmatprep.subr.mxu0 0.0
    %406 = vmatpush2.msra.mxu0 0.0
    %407 = vmatprep.subr.mxu0 0.0
    %408 = vmatpush2.msra.mxu0 0.0
    %409 = vmatprep.subr.mxu0 0.0
    %410 = vmatpush2.msra.mxu0 0.0
    %411 = vmatprep.subr.mxu0 0.0
    %412 = vmatpush2.msra.mxu0 0.0
    %413 = vmatprep.subr.mxu0 0.0
    %414 = vmatpush2.msra.mxu0 0.0
    %415 = vmatprep.subr.mxu0 0.0
    %416 = vmatpush2.msra.mxu0 0.0
    %417 = vmatprep.subr.mxu0 0.0
    %418 = vmatpush2.msra.mxu0 0.0
    %419 = vmatprep.mubr.f32.mxu0 0.0
    %420 = vmatmul.mubr.f32.gmra.mxu0 %v281
    %v421 = vpop.f32.mrf.mxu0
    %v422 = vadd.f32 0.0, %v421
    %v423 = vpop.f32.mrf.mxu0
    %424 = vdwg.mxu0
    %v425 = vadd.f32 %v354, %v422
    %v426 = vmax.f32 %v425, 0.0
    %v428 = vsel %vm180, %v426, 0
    %430 = vmatprep.subr.mxu0 0.0
    %431 = vmatpush1.msra.mxu0 0.0
    %432 = vmatprep.subr.mxu0 0.0
    %433 = vmatpush1.msra.mxu0 0.0
    %434 = vmatprep.subr.mxu0 0.0
    %435 = vmatpush1.msra.mxu0 0.0
    %436 = vmatprep.subr.mxu0 0.0
    %437 = vmatpush1.msra.mxu0 0.0
    %438 = vmatprep.subr.mxu0 0.0
    %439 = vmatpush1.msra.mxu0 0.0
    %440 = vmatprep.subr.mxu0 0.0
    %441 = vmatpush1.msra.mxu0 0.0
    %442 = vmatprep.subr.mxu0 0.0
    %443 = vmatpush1.msra.mxu0 0.0
    %444 = vmatprep.subr.mxu0 0.0
    %445 = vmatpush1.msra.mxu0 0.0
    %446 = vmatprep.subr.mxu0 0.0
    %447 = vmatpush1.msra.mxu0 0.0
    %448 = vmatprep.subr.mxu0 0.0
    %449 = vmatpush1.msra.mxu0 0.0
    %450 = vmatprep.subr.mxu0 0.0
    %451 = vmatpush1.msra.mxu0 0.0
    %452 = vmatprep.subr.mxu0 0.0
    %453 = vmatpush1.msra.mxu0 0.0
    %454 = vmatprep.subr.mxu0 0.0
    %455 = vmatpush1.msra.mxu0 %v196
    %456 = vmatprep.subr.mxu0 0.0
    %457 = vmatpush1.msra.mxu0 %v195
    %458 = vmatprep.subr.mxu0 0.0
    %459 = vmatpush1.msra.mxu0 %v194
    %460 = vmatprep.subr.mxu0 0.0
    %461 = vmatpush1.msra.mxu0 %v193
    %462 = vmatprep.subr.mxu0 0.0
    %463 = vmatpush2.msra.mxu0 0.0
    %464 = vmatprep.subr.mxu0 0.0
    %465 = vmatpush2.msra.mxu0 0.0
    %466 = vmatprep.subr.mxu0 0.0
    %467 = vmatpush2.msra.mxu0 0.0
    %468 = vmatprep.subr.mxu0 0.0
    %469 = vmatpush2.msra.mxu0 0.0
    %470 = vmatprep.subr.mxu0 0.0
    %471 = vmatpush2.msra.mxu0 0.0
    %472 = vmatprep.subr.mxu0 0.0
    %473 = vmatpush2.msra.mxu0 0.0
    %474 = vmatprep.subr.mxu0 0.0
    %475 = vmatpush2.msra.mxu0 0.0
    %476 = vmatprep.subr.mxu0 0.0
    %477 = vmatpush2.msra.mxu0 0.0
    %478 = vmatprep.subr.mxu0 0.0
    %479 = vmatpush2.msra.mxu0 0.0
    %480 = vmatprep.subr.mxu0 0.0
    %481 = vmatpush2.msra.mxu0 0.0
    %482 = vmatprep.subr.mxu0 0.0
    %483 = vmatpush2.msra.mxu0 0.0
    %484 = vmatprep.subr.mxu0 0.0
    %485 = vmatpush2.msra.mxu0 0.0
    %486 = vmatprep.subr.mxu0 0.0
    %487 = vmatpush2.msra.mxu0 0.0
    %488 = vmatprep.subr.mxu0 0.0
    %489 = vmatpush2.msra.mxu0 0.0
    %490 = vmatprep.subr.mxu0 0.0
    %491 = vmatpush2.msra.mxu0 0.0
    %492 = vmatprep.subr.mxu0 0.0
    %493 = vmatpush2.msra.mxu0 0.0
    %494 = vmatprep.mubr.f32.mxu0 0.0
    %495 = vmatmul.mubr.f32.gmra.mxu0 %v428
    %v496 = vpop.f32.mrf.mxu0
    %v497 = vadd.f32 %v278, %v496
    %v498 = vpop.f32.mrf.mxu0
    %499 = vdwg.mxu0
    %500 = vst.msk [vmem:[#allocation2 + $0x8] sm:$0xff] %vm180, %v497
    %v501 = vld [vmem:[#allocation2 + $0x10] sm:$0xff]
    %502 = vmatprep.subr.mxu0 0.0
    %503 = vmatpush1.msra.mxu0 0.0
    %504 = vmatprep.subr.mxu0 0.0
    %505 = vmatpush1.msra.mxu0 0.0
    %506 = vmatprep.subr.mxu0 0.0
    %507 = vmatpush1.msra.mxu0 0.0
    %508 = vmatprep.subr.mxu0 0.0
    %509 = vmatpush1.msra.mxu0 0.0
    %510 = vmatprep.subr.mxu0 0.0
    %511 = vmatpush1.msra.mxu0 0.0
    %512 = vmatprep.subr.mxu0 0.0
    %513 = vmatpush1.msra.mxu0 0.0
    %514 = vmatprep.subr.mxu0 0.0
    %515 = vmatpush1.msra.mxu0 0.0
    %516 = vmatprep.subr.mxu0 0.0
    %517 = vmatpush1.msra.mxu0 0.0
    %518 = vmatprep.subr.mxu0 0.0
    %519 = vmatpush1.msra.mxu0 0.0
    %520 = vmatprep.subr.mxu0 0.0
    %521 = vmatpush1.msra.mxu0 0.0
    %522 = vmatprep.subr.mxu0 0.0
    %523 = vmatpush1.msra.mxu0 0.0
    %524 = vmatprep.subr.mxu0 0.0
    %525 = vmatpush1.msra.mxu0 0.0
    %526 = vmatprep.subr.mxu0 0.0
    %527 = vmatpush1.msra.mxu0 %v192
    %528 = vmatprep.subr.mxu0 0.0
    %529 = vmatpush1.msra.mxu0 %v191
    %530 = vmatprep.subr.mxu0 0.0
    %531 = vmatpush1.msra.mxu0 %v190
    %532 = vmatprep.subr.mxu0 0.0
    %533 = vmatpush1.msra.mxu0 %v189
    %534 = vmatprep.subr.mxu0 0.0
    %535 = vmatpush2.msra.mxu0 0.0
    %536 = vmatprep.subr.mxu0 0.0
    %537 = vmatpush2.msra.mxu0 0.0
    %538 = vmatprep.subr.mxu0 0.0
    %539 = vmatpush2.msra.mxu0 0.0
    %540 = vmatprep.subr.mxu0 0.0
    %541 = vmatpush2.msra.mxu0 0.0
    %542 = vmatprep.subr.mxu0 0.0
    %543 = vmatpush2.msra.mxu0 0.0
    %544 = vmatprep.subr.mxu0 0.0
    %545 = vmatpush2.msra.mxu0 0.0
    %546 = vmatprep.subr.mxu0 0.0
    %547 = vmatpush2.msra.mxu0 0.0
    %548 = vmatprep.subr.mxu0 0.0
    %549 = vmatpush2.msra.mxu0 0.0
    %550 = vmatprep.subr.mxu0 0.0
    %551 = vmatpush2.msra.mxu0 0.0
    %552 = vmatprep.subr.mxu0 0.0
    %553 = vmatpush2.msra.mxu0 0.0
    %554 = vmatprep.subr.mxu0 0.0
    %555 = vmatpush2.msra.mxu0 0.0
    %556 = vmatprep.subr.mxu0 0.0
    %557 = vmatpush2.msra.mxu0 0.0
    %558 = vmatprep.subr.mxu0 0.0
    %559 = vmatpush2.msra.mxu0 0.0
    %560 = vmatprep.subr.mxu0 0.0
    %561 = vmatpush2.msra.mxu0 0.0
    %562 = vmatprep.subr.mxu0 0.0
    %563 = vmatpush2.msra.mxu0 0.0
    %564 = vmatprep.subr.mxu0 0.0
    %565 = vmatpush2.msra.mxu0 0.0
    %566 = vmatprep.mubr.f32.mxu0 0.0
    %567 = vmatmul.mubr.f32.gmra.mxu0 %v428
    %v568 = vpop.f32.mrf.mxu0
    %v569 = vadd.f32 0.0, %v568
    %v570 = vpop.f32.mrf.mxu0
    %571 = vdwg.mxu0
    %v572 = vadd.f32 %v501, %v569
    %v573 = vmax.f32 %v572, 0.0
    %v575 = vsel %vm180, %v573, 0
    %577 = vmatprep.subr.mxu0 0.0
    %578 = vmatpush1.msra.mxu0 0.0
    %579 = vmatprep.subr.mxu0 0.0
    %580 = vmatpush1.msra.mxu0 0.0
    %581 = vmatprep.subr.mxu0 0.0
    %582 = vmatpush1.msra.mxu0 0.0
    %583 = vmatprep.subr.mxu0 0.0
    %584 = vmatpush1.msra.mxu0 0.0
    %585 = vmatprep.subr.mxu0 0.0
    %586 = vmatpush1.msra.mxu0 0.0
    %587 = vmatprep.subr.mxu0 0.0
    %588 = vmatpush1.msra.mxu0 0.0
    %589 = vmatprep.subr.mxu0 0.0
    %590 = vmatpush1.msra.mxu0 0.0
    %591 = vmatprep.subr.mxu0 0.0
    %592 = vmatpush1.msra.mxu0 0.0
    %593 = vmatprep.subr.mxu0 0.0
    %594 = vmatpush1.msra.mxu0 0.0
    %595 = vmatprep.subr.mxu0 0.0
    %596 = vmatpush1.msra.mxu0 0.0
    %597 = vmatprep.subr.mxu0 0.0
    %598 = vmatpush1.msra.mxu0 0.0
    %599 = vmatprep.subr.mxu0 0.0
    %600 = vmatpush1.msra.mxu0 0.0
    %601 = vmatprep.subr.mxu0 0.0
    %602 = vmatpush1.msra.mxu0 %v196
    %603 = vmatprep.subr.mxu0 0.0
    %604 = vmatpush1.msra.mxu0 %v195
    %605 = vmatprep.subr.mxu0 0.0
    %606 = vmatpush1.msra.mxu0 %v194
    %607 = vmatprep.subr.mxu0 0.0
    %608 = vmatpush1.msra.mxu0 %v193
    %609 = vmatprep.subr.mxu0 0.0
    %610 = vmatpush2.msra.mxu0 0.0
    %611 = vmatprep.subr.mxu0 0.0
    %612 = vmatpush2.msra.mxu0 0.0
    %613 = vmatprep.subr.mxu0 0.0
    %614 = vmatpush2.msra.mxu0 0.0
    %615 = vmatprep.subr.mxu0 0.0
    %616 = vmatpush2.msra.mxu0 0.0
    %617 = vmatprep.subr.mxu0 0.0
    %618 = vmatpush2.msra.mxu0 0.0
    %619 = vmatprep.subr.mxu0 0.0
    %620 = vmatpush2.msra.mxu0 0.0
    %621 = vmatprep.subr.mxu0 0.0
    %622 = vmatpush2.msra.mxu0 0.0
    %623 = vmatprep.subr.mxu0 0.0
    %624 = vmatpush2.msra.mxu0 0.0
    %625 = vmatprep.subr.mxu0 0.0
    %626 = vmatpush2.msra.mxu0 0.0
    %627 = vmatprep.subr.mxu0 0.0
    %628 = vmatpush2.msra.mxu0 0.0
    %629 = vmatprep.subr.mxu0 0.0
    %630 = vmatpush2.msra.mxu0 0.0
    %631 = vmatprep.subr.mxu0 0.0
    %632 = vmatpush2.msra.mxu0 0.0
    %633 = vmatprep.subr.mxu0 0.0
    %634 = vmatpush2.msra.mxu0 0.0
    %635 = vmatprep.subr.mxu0 0.0
    %636 = vmatpush2.msra.mxu0 0.0
    %637 = vmatprep.subr.mxu0 0.0
    %638 = vmatpush2.msra.mxu0 0.0
    %639 = vmatprep.subr.mxu0 0.0
    %640 = vmatpush2.msra.mxu0 0.0
    %641 = vmatprep.mubr.f32.mxu0 0.0
    %642 = vmatmul.mubr.f32.gmra.mxu0 %v575
    %v643 = vpop.f32.mrf.mxu0
    %v644 = vadd.f32 %v278, %v643
    %v645 = vpop.f32.mrf.mxu0
    %646 = vdwg.mxu0
    %647 = vst.msk [vmem:[#allocation2 + $0x10] sm:$0xff] %vm180, %v644
    %v648 = vld [vmem:[#allocation2 + $0x18] sm:$0xff]
    %649 = vmatprep.subr.mxu0 0.0
    %650 = vmatpush1.msra.mxu0 0.0
    %651 = vmatprep.subr.mxu0 0.0
    %652 = vmatpush1.msra.mxu0 0.0
    %653 = vmatprep.subr.mxu0 0.0
    %654 = vmatpush1.msra.mxu0 0.0
    %655 = vmatprep.subr.mxu0 0.0
    %656 = vmatpush1.msra.mxu0 0.0
    %657 = vmatprep.subr.mxu0 0.0
    %658 = vmatpush1.msra.mxu0 0.0
    %659 = vmatprep.subr.mxu0 0.0
    %660 = vmatpush1.msra.mxu0 0.0
    %661 = vmatprep.subr.mxu0 0.0
    %662 = vmatpush1.msra.mxu0 0.0
    %663 = vmatprep.subr.mxu0 0.0
    %664 = vmatpush1.msra.mxu0 0.0
    %665 = vmatprep.subr.mxu0 0.0
    %666 = vmatpush1.msra.mxu0 0.0
    %667 = vmatprep.subr.mxu0 0.0
    %668 = vmatpush1.msra.mxu0 0.0
    %669 = vmatprep.subr.mxu0 0.0
    %670 = vmatpush1.msra.mxu0 0.0
    %671 = vmatprep.subr.mxu0 0.0
    %672 = vmatpush1.msra.mxu0 0.0
    %673 = vmatprep.subr.mxu0 0.0
    %674 = vmatpush1.msra.mxu0 %v192
    %675 = vmatprep.subr.mxu0 0.0
    %676 = vmatpush1.msra.mxu0 %v191
    %677 = vmatprep.subr.mxu0 0.0
    %678 = vmatpush1.msra.mxu0 %v190
    %679 = vmatprep.subr.mxu0 0.0
    %680 = vmatpush1.msra.mxu0 %v189
    %681 = vmatprep.subr.mxu0 0.0
    %682 = vmatpush2.msra.mxu0 0.0
    %683 = vmatprep.subr.mxu0 0.0
    %684 = vmatpush2.msra.mxu0 0.0
    %685 = vmatprep.subr.mxu0 0.0
    %686 = vmatpush2.msra.mxu0 0.0
    %687 = vmatprep.subr.mxu0 0.0
    %688 = vmatpush2.msra.mxu0 0.0
    %689 = vmatprep.subr.mxu0 0.0
    %690 = vmatpush2.msra.mxu0 0.0
    %691 = vmatprep.subr.mxu0 0.0
    %692 = vmatpush2.msra.mxu0 0.0
    %693 = vmatprep.subr.mxu0 0.0
    %694 = vmatpush2.msra.mxu0 0.0
    %695 = vmatprep.subr.mxu0 0.0
    %696 = vmatpush2.msra.mxu0 0.0
    %697 = vmatprep.subr.mxu0 0.0
    %698 = vmatpush2.msra.mxu0 0.0
    %699 = vmatprep.subr.mxu0 0.0
    %700 = vmatpush2.msra.mxu0 0.0
    %701 = vmatprep.subr.mxu0 0.0
    %702 = vmatpush2.msra.mxu0 0.0
    %703 = vmatprep.subr.mxu0 0.0
    %704 = vmatpush2.msra.mxu0 0.0
    %705 = vmatprep.subr.mxu0 0.0
    %706 = vmatpush2.msra.mxu0 0.0
    %707 = vmatprep.subr.mxu0 0.0
    %708 = vmatpush2.msra.mxu0 0.0
    %709 = vmatprep.subr.mxu0 0.0
    %710 = vmatpush2.msra.mxu0 0.0
    %711 = vmatprep.subr.mxu0 0.0
    %712 = vmatpush2.msra.mxu0 0.0
    %713 = vmatprep.mubr.f32.mxu0 0.0
    %714 = vmatmul.mubr.f32.gmra.mxu0 %v575
    %v715 = vpop.f32.mrf.mxu0
    %v716 = vadd.f32 0.0, %v715
    %v717 = vpop.f32.mrf.mxu0
    %718 = vdwg.mxu0
    %v719 = vadd.f32 %v648, %v716
    %v720 = vmax.f32 %v719, 0.0
    %v722 = vsel %vm180, %v720, 0
    %724 = vmatprep.subr.mxu0 0.0
    %725 = vmatpush1.msra.mxu0 0.0
    %726 = vmatprep.subr.mxu0 0.0
    %727 = vmatpush1.msra.mxu0 0.0
    %728 = vmatprep.subr.mxu0 0.0
    %729 = vmatpush1.msra.mxu0 0.0
    %730 = vmatprep.subr.mxu0 0.0
    %731 = vmatpush1.msra.mxu0 0.0
    %732 = vmatprep.subr.mxu0 0.0
    %733 = vmatpush1.msra.mxu0 0.0
    %734 = vmatprep.subr.mxu0 0.0
    %735 = vmatpush1.msra.mxu0 0.0
    %736 = vmatprep.subr.mxu0 0.0
    %737 = vmatpush1.msra.mxu0 0.0
    %738 = vmatprep.subr.mxu0 0.0
    %739 = vmatpush1.msra.mxu0 0.0
    %740 = vmatprep.subr.mxu0 0.0
    %741 = vmatpush1.msra.mxu0 0.0
    %742 = vmatprep.subr.mxu0 0.0
    %743 = vmatpush1.msra.mxu0 0.0
    %744 = vmatprep.subr.mxu0 0.0
    %745 = vmatpush1.msra.mxu0 0.0
    %746 = vmatprep.subr.mxu0 0.0
    %747 = vmatpush1.msra.mxu0 0.0
    %748 = vmatprep.subr.mxu0 0.0
    %749 = vmatpush1.msra.mxu0 %v196
    %750 = vmatprep.subr.mxu0 0.0
    %751 = vmatpush1.msra.mxu0 %v195
    %752 = vmatprep.subr.mxu0 0.0
    %753 = vmatpush1.msra.mxu0 %v194
    %754 = vmatprep.subr.mxu0 0.0
    %755 = vmatpush1.msra.mxu0 %v193
    %756 = vmatprep.subr.mxu0 0.0
    %757 = vmatpush2.msra.mxu0 0.0
    %758 = vmatprep.subr.mxu0 0.0
    %759 = vmatpush2.msra.mxu0 0.0
    %760 = vmatprep.subr.mxu0 0.0
    %761 = vmatpush2.msra.mxu0 0.0
    %762 = vmatprep.subr.mxu0 0.0
    %763 = vmatpush2.msra.mxu0 0.0
    %764 = vmatprep.subr.mxu0 0.0
    %765 = vmatpush2.msra.mxu0 0.0
    %766 = vmatprep.subr.mxu0 0.0
    %767 = vmatpush2.msra.mxu0 0.0
    %768 = vmatprep.subr.mxu0 0.0
    %769 = vmatpush2.msra.mxu0 0.0
    %770 = vmatprep.subr.mxu0 0.0
    %771 = vmatpush2.msra.mxu0 0.0
    %772 = vmatprep.subr.mxu0 0.0
    %773 = vmatpush2.msra.mxu0 0.0
    %774 = vmatprep.subr.mxu0 0.0
    %775 = vmatpush2.msra.mxu0 0.0
    %776 = vmatprep.subr.mxu0 0.0
    %777 = vmatpush2.msra.mxu0 0.0
    %778 = vmatprep.subr.mxu0 0.0
    %779 = vmatpush2.msra.mxu0 0.0
    %780 = vmatprep.subr.mxu0 0.0
    %781 = vmatpush2.msra.mxu0 0.0
    %782 = vmatprep.subr.mxu0 0.0
    %783 = vmatpush2.msra.mxu0 0.0
    %784 = vmatprep.subr.mxu0 0.0
    %785 = vmatpush2.msra.mxu0 0.0
    %786 = vmatprep.subr.mxu0 0.0
    %787 = vmatpush2.msra.mxu0 0.0
    %788 = vmatprep.mubr.f32.mxu0 0.0
    %789 = vmatmul.mubr.f32.gmra.mxu0 %v722
    %v790 = vpop.f32.mrf.mxu0
    %v791 = vadd.f32 %v278, %v790
    %v792 = vpop.f32.mrf.mxu0
    %793 = vdwg.mxu0
    %794 = vst.msk [vmem:[#allocation2 + $0x18] sm:$0xff] %vm180, %v791
    %v795 = vld [vmem:[#allocation2 + $0x20] sm:$0xff]
    %796 = vmatprep.subr.mxu0 0.0
    %797 = vmatpush1.msra.mxu0 0.0
    %798 = vmatprep.subr.mxu0 0.0
    %799 = vmatpush1.msra.mxu0 0.0
    %800 = vmatprep.subr.mxu0 0.0
    %801 = vmatpush1.msra.mxu0 0.0
    %802 = vmatprep.subr.mxu0 0.0
    %803 = vmatpush1.msra.mxu0 0.0
    %804 = vmatprep.subr.mxu0 0.0
    %805 = vmatpush1.msra.mxu0 0.0
    %806 = vmatprep.subr.mxu0 0.0
    %807 = vmatpush1.msra.mxu0 0.0
    %808 = vmatprep.subr.mxu0 0.0
    %809 = vmatpush1.msra.mxu0 0.0
    %810 = vmatprep.subr.mxu0 0.0
    %811 = vmatpush1.msra.mxu0 0.0
    %812 = vmatprep.subr.mxu0 0.0
    %813 = vmatpush1.msra.mxu0 0.0
    %814 = vmatprep.subr.mxu0 0.0
    %815 = vmatpush1.msra.mxu0 0.0
    %816 = vmatprep.subr.mxu0 0.0
    %817 = vmatpush1.msra.mxu0 0.0
    %818 = vmatprep.subr.mxu0 0.0
    %819 = vmatpush1.msra.mxu0 0.0
    %820 = vmatprep.subr.mxu0 0.0
    %821 = vmatpush1.msra.mxu0 %v192
    %822 = vmatprep.subr.mxu0 0.0
    %823 = vmatpush1.msra.mxu0 %v191
    %824 = vmatprep.subr.mxu0 0.0
    %825 = vmatpush1.msra.mxu0 %v190
    %826 = vmatprep.subr.mxu0 0.0
    %827 = vmatpush1.msra.mxu0 %v189
    %828 = vmatprep.subr.mxu0 0.0
    %829 = vmatpush2.msra.mxu0 0.0
    %830 = vmatprep.subr.mxu0 0.0
    %831 = vmatpush2.msra.mxu0 0.0
    %832 = vmatprep.subr.mxu0 0.0
    %833 = vmatpush2.msra.mxu0 0.0
    %834 = vmatprep.subr.mxu0 0.0
    %835 = vmatpush2.msra.mxu0 0.0
    %836 = vmatprep.subr.mxu0 0.0
    %837 = vmatpush2.msra.mxu0 0.0
    %838 = vmatprep.subr.mxu0 0.0
    %839 = vmatpush2.msra.mxu0 0.0
    %840 = vmatprep.subr.mxu0 0.0
    %841 = vmatpush2.msra.mxu0 0.0
    %842 = vmatprep.subr.mxu0 0.0
    %843 = vmatpush2.msra.mxu0 0.0
    %844 = vmatprep.subr.mxu0 0.0
    %845 = vmatpush2.msra.mxu0 0.0
    %846 = vmatprep.subr.mxu0 0.0
    %847 = vmatpush2.msra.mxu0 0.0
    %848 = vmatprep.subr.mxu0 0.0
    %849 = vmatpush2.msra.mxu0 0.0
    %850 = vmatprep.subr.mxu0 0.0
    %851 = vmatpush2.msra.mxu0 0.0
    %852 = vmatprep.subr.mxu0 0.0
    %853 = vmatpush2.msra.mxu0 0.0
    %854 = vmatprep.subr.mxu0 0.0
    %855 = vmatpush2.msra.mxu0 0.0
    %856 = vmatprep.subr.mxu0 0.0
    %857 = vmatpush2.msra.mxu0 0.0
    %858 = vmatprep.subr.mxu0 0.0
    %859 = vmatpush2.msra.mxu0 0.0
    %860 = vmatprep.mubr.f32.mxu0 0.0
    %861 = vmatmul.mubr.f32.gmra.mxu0 %v722
    %v862 = vpop.f32.mrf.mxu0
    %v863 = vadd.f32 0.0, %v862
    %v864 = vpop.f32.mrf.mxu0
    %865 = vdwg.mxu0
    %v866 = vadd.f32 %v795, %v863
    %v867 = vmax.f32 %v866, 0.0
    %v869 = vsel %vm180, %v867, 0
    %871 = vmatprep.subr.mxu0 0.0
    %872 = vmatpush1.msra.mxu0 0.0
    %873 = vmatprep.subr.mxu0 0.0
    %874 = vmatpush1.msra.mxu0 0.0
    %875 = vmatprep.subr.mxu0 0.0
    %876 = vmatpush1.msra.mxu0 0.0
    %877 = vmatprep.subr.mxu0 0.0
    %878 = vmatpush1.msra.mxu0 0.0
    %879 = vmatprep.subr.mxu0 0.0
    %880 = vmatpush1.msra.mxu0 0.0
    %881 = vmatprep.subr.mxu0 0.0
    %882 = vmatpush1.msra.mxu0 0.0
    %883 = vmatprep.subr.mxu0 0.0
    %884 = vmatpush1.msra.mxu0 0.0
    %885 = vmatprep.subr.mxu0 0.0
    %886 = vmatpush1.msra.mxu0 0.0
    %887 = vmatprep.subr.mxu0 0.0
    %888 = vmatpush1.msra.mxu0 0.0
    %889 = vmatprep.subr.mxu0 0.0
    %890 = vmatpush1.msra.mxu0 0.0
    %891 = vmatprep.subr.mxu0 0.0
    %892 = vmatpush1.msra.mxu0 0.0
    %893 = vmatprep.subr.mxu0 0.0
    %894 = vmatpush1.msra.mxu0 0.0
    %895 = vmatprep.subr.mxu0 0.0
    %896 = vmatpush1.msra.mxu0 %v196
    %897 = vmatprep.subr.mxu0 0.0
    %898 = vmatpush1.msra.mxu0 %v195
    %899 = vmatprep.subr.mxu0 0.0
    %900 = vmatpush1.msra.mxu0 %v194
    %901 = vmatprep.subr.mxu0 0.0
    %902 = vmatpush1.msra.mxu0 %v193
    %903 = vmatprep.subr.mxu0 0.0
    %904 = vmatpush2.msra.mxu0 0.0
    %905 = vmatprep.subr.mxu0 0.0
    %906 = vmatpush2.msra.mxu0 0.0
    %907 = vmatprep.subr.mxu0 0.0
    %908 = vmatpush2.msra.mxu0 0.0
    %909 = vmatprep.subr.mxu0 0.0
    %910 = vmatpush2.msra.mxu0 0.0
    %911 = vmatprep.subr.mxu0 0.0
    %912 = vmatpush2.msra.mxu0 0.0
    %913 = vmatprep.subr.mxu0 0.0
    %914 = vmatpush2.msra.mxu0 0.0
    %915 = vmatprep.subr.mxu0 0.0
    %916 = vmatpush2.msra.mxu0 0.0
    %917 = vmatprep.subr.mxu0 0.0
    %918 = vmatpush2.msra.mxu0 0.0
    %919 = vmatprep.subr.mxu0 0.0
    %920 = vmatpush2.msra.mxu0 0.0
    %921 = vmatprep.subr.mxu0 0.0
    %922 = vmatpush2.msra.mxu0 0.0
    %923 = vmatprep.subr.mxu0 0.0
    %924 = vmatpush2.msra.mxu0 0.0
    %925 = vmatprep.subr.mxu0 0.0
    %926 = vmatpush2.msra.mxu0 0.0
    %927 = vmatprep.subr.mxu0 0.0
    %928 = vmatpush2.msra.mxu0 0.0
    %929 = vmatprep.subr.mxu0 0.0
    %930 = vmatpush2.msra.mxu0 0.0
    %931 = vmatprep.subr.mxu0 0.0
    %932 = vmatpush2.msra.mxu0 0.0
    %933 = vmatprep.subr.mxu0 0.0
    %934 = vmatpush2.msra.mxu0 0.0
    %935 = vmatprep.mubr.f32.mxu0 0.0
    %936 = vmatmul.mubr.f32.gmra.mxu0 %v869
    %v937 = vpop.f32.mrf.mxu0
    %v938 = vadd.f32 %v278, %v937
    %v939 = vpop.f32.mrf.mxu0
    %940 = vdwg.mxu0
    %941 = vst.msk [vmem:[#allocation2 + $0x20] sm:$0xff] %vm180, %v938
    %v942 = vld [vmem:[#allocation2 + $0x28] sm:$0xff]
    %943 = vmatprep.subr.mxu0 0.0
    %944 = vmatpush1.msra.mxu0 0.0
    %945 = vmatprep.subr.mxu0 0.0
    %946 = vmatpush1.msra.mxu0 0.0
    %947 = vmatprep.subr.mxu0 0.0
    %948 = vmatpush1.msra.mxu0 0.0
    %949 = vmatprep.subr.mxu0 0.0
    %950 = vmatpush1.msra.mxu0 0.0
    %951 = vmatprep.subr.mxu0 0.0
    %952 = vmatpush1.msra.mxu0 0.0
    %953 = vmatprep.subr.mxu0 0.0
    %954 = vmatpush1.msra.mxu0 0.0
    %955 = vmatprep.subr.mxu0 0.0
    %956 = vmatpush1.msra.mxu0 0.0
    %957 = vmatprep.subr.mxu0 0.0
    %958 = vmatpush1.msra.mxu0 0.0
    %959 = vmatprep.subr.mxu0 0.0
    %960 = vmatpush1.msra.mxu0 0.0
    %961 = vmatprep.subr.mxu0 0.0
    %962 = vmatpush1.msra.mxu0 0.0
    %963 = vmatprep.subr.mxu0 0.0
    %964 = vmatpush1.msra.mxu0 0.0
    %965 = vmatprep.subr.mxu0 0.0
    %966 = vmatpush1.msra.mxu0 0.0
    %967 = vmatprep.subr.mxu0 0.0
    %968 = vmatpush1.msra.mxu0 %v192
    %969 = vmatprep.subr.mxu0 0.0
    %970 = vmatpush1.msra.mxu0 %v191
    %971 = vmatprep.subr.mxu0 0.0
    %972 = vmatpush1.msra.mxu0 %v190
    %973 = vmatprep.subr.mxu0 0.0
    %974 = vmatpush1.msra.mxu0 %v189
    %975 = vmatprep.subr.mxu0 0.0
    %976 = vmatpush2.msra.mxu0 0.0
    %977 = vmatprep.subr.mxu0 0.0
    %978 = vmatpush2.msra.mxu0 0.0
    %979 = vmatprep.subr.mxu0 0.0
    %980 = vmatpush2.msra.mxu0 0.0
    %981 = vmatprep.subr.mxu0 0.0
    %982 = vmatpush2.msra.mxu0 0.0
    %983 = vmatprep.subr.mxu0 0.0
    %984 = vmatpush2.msra.mxu0 0.0
    %985 = vmatprep.subr.mxu0 0.0
    %986 = vmatpush2.msra.mxu0 0.0
    %987 = vmatprep.subr.mxu0 0.0
    %988 = vmatpush2.msra.mxu0 0.0
    %989 = vmatprep.subr.mxu0 0.0
    %990 = vmatpush2.msra.mxu0 0.0
    %991 = vmatprep.subr.mxu0 0.0
    %992 = vmatpush2.msra.mxu0 0.0
    %993 = vmatprep.subr.mxu0 0.0
    %994 = vmatpush2.msra.mxu0 0.0
    %995 = vmatprep.subr.mxu0 0.0
    %996 = vmatpush2.msra.mxu0 0.0
    %997 = vmatprep.subr.mxu0 0.0
    %998 = vmatpush2.msra.mxu0 0.0
    %999 = vmatprep.subr.mxu0 0.0
    %1000 = vmatpush2.msra.mxu0 0.0
    %1001 = vmatprep.subr.mxu0 0.0
    %1002 = vmatpush2.msra.mxu0 0.0
    %1003 = vmatprep.subr.mxu0 0.0
    %1004 = vmatpush2.msra.mxu0 0.0
    %1005 = vmatprep.subr.mxu0 0.0
    %1006 = vmatpush2.msra.mxu0 0.0
    %1007 = vmatprep.mubr.f32.mxu0 0.0
    %1008 = vmatmul.mubr.f32.gmra.mxu0 %v869
    %v1009 = vpop.f32.mrf.mxu0
    %v1010 = vadd.f32 0.0, %v1009
    %v1011 = vpop.f32.mrf.mxu0
    %1012 = vdwg.mxu0
    %v1013 = vadd.f32 %v942, %v1010
    %v1014 = vmax.f32 %v1013, 0.0
    %v1016 = vsel %vm180, %v1014, 0
    %1018 = vmatprep.subr.mxu0 0.0
    %1019 = vmatpush1.msra.mxu0 0.0
    %1020 = vmatprep.subr.mxu0 0.0
    %1021 = vmatpush1.msra.mxu0 0.0
    %1022 = vmatprep.subr.mxu0 0.0
    %1023 = vmatpush1.msra.mxu0 0.0
    %1024 = vmatprep.subr.mxu0 0.0
    %1025 = vmatpush1.msra.mxu0 0.0
    %1026 = vmatprep.subr.mxu0 0.0
    %1027 = vmatpush1.msra.mxu0 0.0
    %1028 = vmatprep.subr.mxu0 0.0
    %1029 = vmatpush1.msra.mxu0 0.0
    %1030 = vmatprep.subr.mxu0 0.0
    %1031 = vmatpush1.msra.mxu0 0.0
    %1032 = vmatprep.subr.mxu0 0.0
    %1033 = vmatpush1.msra.mxu0 0.0
    %1034 = vmatprep.subr.mxu0 0.0
    %1035 = vmatpush1.msra.mxu0 0.0
    %1036 = vmatprep.subr.mxu0 0.0
    %1037 = vmatpush1.msra.mxu0 0.0
    %1038 = vmatprep.subr.mxu0 0.0
    %1039 = vmatpush1.msra.mxu0 0.0
    %1040 = vmatprep.subr.mxu0 0.0
    %1041 = vmatpush1.msra.mxu0 0.0
    %1042 = vmatprep.subr.mxu0 0.0
    %1043 = vmatpush1.msra.mxu0 %v196
    %1044 = vmatprep.subr.mxu0 0.0
    %1045 = vmatpush1.msra.mxu0 %v195
    %1046 = vmatprep.subr.mxu0 0.0
    %1047 = vmatpush1.msra.mxu0 %v194
    %1048 = vmatprep.subr.mxu0 0.0
    %1049 = vmatpush1.msra.mxu0 %v193
    %1050 = vmatprep.subr.mxu0 0.0
    %1051 = vmatpush2.msra.mxu0 0.0
    %1052 = vmatprep.subr.mxu0 0.0
    %1053 = vmatpush2.msra.mxu0 0.0
    %1054 = vmatprep.subr.mxu0 0.0
    %1055 = vmatpush2.msra.mxu0 0.0
    %1056 = vmatprep.subr.mxu0 0.0
    %1057 = vmatpush2.msra.mxu0 0.0
    %1058 = vmatprep.subr.mxu0 0.0
    %1059 = vmatpush2.msra.mxu0 0.0
    %1060 = vmatprep.subr.mxu0 0.0
    %1061 = vmatpush2.msra.mxu0 0.0
    %1062 = vmatprep.subr.mxu0 0.0
    %1063 = vmatpush2.msra.mxu0 0.0
    %1064 = vmatprep.subr.mxu0 0.0
    %1065 = vmatpush2.msra.mxu0 0.0
    %1066 = vmatprep.subr.mxu0 0.0
    %1067 = vmatpush2.msra.mxu0 0.0
    %1068 = vmatprep.subr.mxu0 0.0
    %1069 = vmatpush2.msra.mxu0 0.0
    %1070 = vmatprep.subr.mxu0 0.0
    %1071 = vmatpush2.msra.mxu0 0.0
    %1072 = vmatprep.subr.mxu0 0.0
    %1073 = vmatpush2.msra.mxu0 0.0
    %1074 = vmatprep.subr.mxu0 0.0
    %1075 = vmatpush2.msra.mxu0 0.0
    %1076 = vmatprep.subr.mxu0 0.0
    %1077 = vmatpush2.msra.mxu0 0.0
    %1078 = vmatprep.subr.mxu0 0.0
    %1079 = vmatpush2.msra.mxu0 0.0
    %1080 = vmatprep.subr.mxu0 0.0
    %1081 = vmatpush2.msra.mxu0 0.0
    %1082 = vmatprep.mubr.f32.mxu0 0.0
    %1083 = vmatmul.mubr.f32.gmra.mxu0 %v1016
    %v1084 = vpop.f32.mrf.mxu0
    %v1085 = vadd.f32 %v278, %v1084
    %v1086 = vpop.f32.mrf.mxu0
    %1087 = vdwg.mxu0
    %1088 = vst.msk [vmem:[#allocation2 + $0x28] sm:$0xff] %vm180, %v1085
    %v1089 = vld [vmem:[#allocation2 + $0x30] sm:$0xff]
    %1090 = vmatprep.subr.mxu0 0.0
    %1091 = vmatpush1.msra.mxu0 0.0
    %1092 = vmatprep.subr.mxu0 0.0
    %1093 = vmatpush1.msra.mxu0 0.0
    %1094 = vmatprep.subr.mxu0 0.0
    %1095 = vmatpush1.msra.mxu0 0.0
    %1096 = vmatprep.subr.mxu0 0.0
    %1097 = vmatpush1.msra.mxu0 0.0
    %1098 = vmatprep.subr.mxu0 0.0
    %1099 = vmatpush1.msra.mxu0 0.0
    %1100 = vmatprep.subr.mxu0 0.0
    %1101 = vmatpush1.msra.mxu0 0.0
    %1102 = vmatprep.subr.mxu0 0.0
    %1103 = vmatpush1.msra.mxu0 0.0
    %1104 = vmatprep.subr.mxu0 0.0
    %1105 = vmatpush1.msra.mxu0 0.0
    %1106 = vmatprep.subr.mxu0 0.0
    %1107 = vmatpush1.msra.mxu0 0.0
    %1108 = vmatprep.subr.mxu0 0.0
    %1109 = vmatpush1.msra.mxu0 0.0
    %1110 = vmatprep.subr.mxu0 0.0
    %1111 = vmatpush1.msra.mxu0 0.0
    %1112 = vmatprep.subr.mxu0 0.0
    %1113 = vmatpush1.msra.mxu0 0.0
    %1114 = vmatprep.subr.mxu0 0.0
    %1115 = vmatpush1.msra.mxu0 %v192
    %1116 = vmatprep.subr.mxu0 0.0
    %1117 = vmatpush1.msra.mxu0 %v191
    %1118 = vmatprep.subr.mxu0 0.0
    %1119 = vmatpush1.msra.mxu0 %v190
    %1120 = vmatprep.subr.mxu0 0.0
    %1121 = vmatpush1.msra.mxu0 %v189
    %1122 = vmatprep.subr.mxu0 0.0
    %1123 = vmatpush2.msra.mxu0 0.0
    %1124 = vmatprep.subr.mxu0 0.0
    %1125 = vmatpush2.msra.mxu0 0.0
    %1126 = vmatprep.subr.mxu0 0.0
    %1127 = vmatpush2.msra.mxu0 0.0
    %1128 = vmatprep.subr.mxu0 0.0
    %1129 = vmatpush2.msra.mxu0 0.0
    %1130 = vmatprep.subr.mxu0 0.0
    %1131 = vmatpush2.msra.mxu0 0.0
    %1132 = vmatprep.subr.mxu0 0.0
    %1133 = vmatpush2.msra.mxu0 0.0
    %1134 = vmatprep.subr.mxu0 0.0
    %1135 = vmatpush2.msra.mxu0 0.0
    %1136 = vmatprep.subr.mxu0 0.0
    %1137 = vmatpush2.msra.mxu0 0.0
    %1138 = vmatprep.subr.mxu0 0.0
    %1139 = vmatpush2.msra.mxu0 0.0
    %1140 = vmatprep.subr.mxu0 0.0
    %1141 = vmatpush2.msra.mxu0 0.0
    %1142 = vmatprep.subr.mxu0 0.0
    %1143 = vmatpush2.msra.mxu0 0.0
    %1144 = vmatprep.subr.mxu0 0.0
    %1145 = vmatpush2.msra.mxu0 0.0
    %1146 = vmatprep.subr.mxu0 0.0
    %1147 = vmatpush2.msra.mxu0 0.0
    %1148 = vmatprep.subr.mxu0 0.0
    %1149 = vmatpush2.msra.mxu0 0.0
    %1150 = vmatprep.subr.mxu0 0.0
    %1151 = vmatpush2.msra.mxu0 0.0
    %1152 = vmatprep.subr.mxu0 0.0
    %1153 = vmatpush2.msra.mxu0 0.0
    %1154 = vmatprep.mubr.f32.mxu0 0.0
    %1155 = vmatmul.mubr.f32.gmra.mxu0 %v1016
    %v1156 = vpop.f32.mrf.mxu0
    %v1157 = vadd.f32 0.0, %v1156
    %v1158 = vpop.f32.mrf.mxu0
    %1159 = vdwg.mxu0
    %v1160 = vadd.f32 %v1089, %v1157
    %v1161 = vmax.f32 %v1160, 0.0
    %v1163 = vsel %vm180, %v1161, 0
    %1165 = vmatprep.subr.mxu0 0.0
    %1166 = vmatpush1.msra.mxu0 0.0
    %1167 = vmatprep.subr.mxu0 0.0
    %1168 = vmatpush1.msra.mxu0 0.0
    %1169 = vmatprep.subr.mxu0 0.0
    %1170 = vmatpush1.msra.mxu0 0.0
    %1171 = vmatprep.subr.mxu0 0.0
    %1172 = vmatpush1.msra.mxu0 0.0
    %1173 = vmatprep.subr.mxu0 0.0
    %1174 = vmatpush1.msra.mxu0 0.0
    %1175 = vmatprep.subr.mxu0 0.0
    %1176 = vmatpush1.msra.mxu0 0.0
    %1177 = vmatprep.subr.mxu0 0.0
    %1178 = vmatpush1.msra.mxu0 0.0
    %1179 = vmatprep.subr.mxu0 0.0
    %1180 = vmatpush1.msra.mxu0 0.0
    %1181 = vmatprep.subr.mxu0 0.0
    %1182 = vmatpush1.msra.mxu0 0.0
    %1183 = vmatprep.subr.mxu0 0.0
    %1184 = vmatpush1.msra.mxu0 0.0
    %1185 = vmatprep.subr.mxu0 0.0
    %1186 = vmatpush1.msra.mxu0 0.0
    %1187 = vmatprep.subr.mxu0 0.0
    %1188 = vmatpush1.msra.mxu0 0.0
    %1189 = vmatprep.subr.mxu0 0.0
    %1190 = vmatpush1.msra.mxu0 %v196
    %1191 = vmatprep.subr.mxu0 0.0
    %1192 = vmatpush1.msra.mxu0 %v195
    %1193 = vmatprep.subr.mxu0 0.0
    %1194 = vmatpush1.msra.mxu0 %v194
    %1195 = vmatprep.subr.mxu0 0.0
    %1196 = vmatpush1.msra.mxu0 %v193
    %1197 = vmatprep.subr.mxu0 0.0
    %1198 = vmatpush2.msra.mxu0 0.0
    %1199 = vmatprep.subr.mxu0 0.0
    %1200 = vmatpush2.msra.mxu0 0.0
    %1201 = vmatprep.subr.mxu0 0.0
    %1202 = vmatpush2.msra.mxu0 0.0
    %1203 = vmatprep.subr.mxu0 0.0
    %1204 = vmatpush2.msra.mxu0 0.0
    %1205 = vmatprep.subr.mxu0 0.0
    %1206 = vmatpush2.msra.mxu0 0.0
    %1207 = vmatprep.subr.mxu0 0.0
    %1208 = vmatpush2.msra.mxu0 0.0
    %1209 = vmatprep.subr.mxu0 0.0
    %1210 = vmatpush2.msra.mxu0 0.0
    %1211 = vmatprep.subr.mxu0 0.0
    %1212 = vmatpush2.msra.mxu0 0.0
    %1213 = vmatprep.subr.mxu0 0.0
    %1214 = vmatpush2.msra.mxu0 0.0
    %1215 = vmatprep.subr.mxu0 0.0
    %1216 = vmatpush2.msra.mxu0 0.0
    %1217 = vmatprep.subr.mxu0 0.0
    %1218 = vmatpush2.msra.mxu0 0.0
    %1219 = vmatprep.subr.mxu0 0.0
    %1220 = vmatpush2.msra.mxu0 0.0
    %1221 = vmatprep.subr.mxu0 0.0
    %1222 = vmatpush2.msra.mxu0 0.0
    %1223 = vmatprep.subr.mxu0 0.0
    %1224 = vmatpush2.msra.mxu0 0.0
    %1225 = vmatprep.subr.mxu0 0.0
    %1226 = vmatpush2.msra.mxu0 0.0
    %1227 = vmatprep.subr.mxu0 0.0
    %1228 = vmatpush2.msra.mxu0 0.0
    %1229 = vmatprep.mubr.f32.mxu0 0.0
    %1230 = vmatmul.mubr.f32.gmra.mxu0 %v1163
    %v1231 = vpop.f32.mrf.mxu0
    %v1232 = vadd.f32 %v278, %v1231
    %v1233 = vpop.f32.mrf.mxu0
    %1234 = vdwg.mxu0
    %1235 = vst.msk [vmem:[#allocation2 + $0x30] sm:$0xff] %vm180, %v1232
    %v1236 = vld [vmem:[#allocation2 + $0x38] sm:$0xff]
    %1237 = vmatprep.subr.mxu0 0.0
    %1238 = vmatpush1.msra.mxu0 0.0
    %1239 = vmatprep.subr.mxu0 0.0
    %1240 = vmatpush1.msra.mxu0 0.0
    %1241 = vmatprep.subr.mxu0 0.0
    %1242 = vmatpush1.msra.mxu0 0.0
    %1243 = vmatprep.subr.mxu0 0.0
    %1244 = vmatpush1.msra.mxu0 0.0
    %1245 = vmatprep.subr.mxu0 0.0
    %1246 = vmatpush1.msra.mxu0 0.0
    %1247 = vmatprep.subr.mxu0 0.0
    %1248 = vmatpush1.msra.mxu0 0.0
    %1249 = vmatprep.subr.mxu0 0.0
    %1250 = vmatpush1.msra.mxu0 0.0
    %1251 = vmatprep.subr.mxu0 0.0
    %1252 = vmatpush1.msra.mxu0 0.0
    %1253 = vmatprep.subr.mxu0 0.0
    %1254 = vmatpush1.msra.mxu0 0.0
    %1255 = vmatprep.subr.mxu0 0.0
    %1256 = vmatpush1.msra.mxu0 0.0
    %1257 = vmatprep.subr.mxu0 0.0
    %1258 = vmatpush1.msra.mxu0 0.0
    %1259 = vmatprep.subr.mxu0 0.0
    %1260 = vmatpush1.msra.mxu0 0.0
    %1261 = vmatprep.subr.mxu0 0.0
    %1262 = vmatpush1.msra.mxu0 %v192
    %1263 = vmatprep.subr.mxu0 0.0
    %1264 = vmatpush1.msra.mxu0 %v191
    %1265 = vmatprep.subr.mxu0 0.0
    %1266 = vmatpush1.msra.mxu0 %v190
    %1267 = vmatprep.subr.mxu0 0.0
    %1268 = vmatpush1.msra.mxu0 %v189
    %1269 = vmatprep.subr.mxu0 0.0
    %1270 = vmatpush2.msra.mxu0 0.0
    %1271 = vmatprep.subr.mxu0 0.0
    %1272 = vmatpush2.msra.mxu0 0.0
    %1273 = vmatprep.subr.mxu0 0.0
    %1274 = vmatpush2.msra.mxu0 0.0
    %1275 = vmatprep.subr.mxu0 0.0
    %1276 = vmatpush2.msra.mxu0 0.0
    %1277 = vmatprep.subr.mxu0 0.0
    %1278 = vmatpush2.msra.mxu0 0.0
    %1279 = vmatprep.subr.mxu0 0.0
    %1280 = vmatpush2.msra.mxu0 0.0
    %1281 = vmatprep.subr.mxu0 0.0
    %1282 = vmatpush2.msra.mxu0 0.0
    %1283 = vmatprep.subr.mxu0 0.0
    %1284 = vmatpush2.msra.mxu0 0.0
    %1285 = vmatprep.subr.mxu0 0.0
    %1286 = vmatpush2.msra.mxu0 0.0
    %1287 = vmatprep.subr.mxu0 0.0
    %1288 = vmatpush2.msra.mxu0 0.0
    %1289 = vmatprep.subr.mxu0 0.0
    %1290 = vmatpush2.msra.mxu0 0.0
    %1291 = vmatprep.subr.mxu0 0.0
    %1292 = vmatpush2.msra.mxu0 0.0
    %1293 = vmatprep.subr.mxu0 0.0
    %1294 = vmatpush2.msra.mxu0 0.0
    %1295 = vmatprep.subr.mxu0 0.0
    %1296 = vmatpush2.msra.mxu0 0.0
    %1297 = vmatprep.subr.mxu0 0.0
    %1298 = vmatpush2.msra.mxu0 0.0
    %1299 = vmatprep.subr.mxu0 0.0
    %1300 = vmatpush2.msra.mxu0 0.0
    %1301 = vmatprep.mubr.f32.mxu0 0.0
    %1302 = vmatmul.mubr.f32.gmra.mxu0 %v1163
    %v1303 = vpop.f32.mrf.mxu0
    %v1304 = vadd.f32 0.0, %v1303
    %v1305 = vpop.f32.mrf.mxu0
    %1306 = vdwg.mxu0
    %v1307 = vadd.f32 %v1236, %v1304
    %v1308 = vmax.f32 %v1307, 0.0
    %v1310 = vsel %vm180, %v1308, 0
    %1312 = vmatprep.subr.mxu0 0.0
    %1313 = vmatpush1.msra.mxu0 0.0
    %1314 = vmatprep.subr.mxu0 0.0
    %1315 = vmatpush1.msra.mxu0 0.0
    %1316 = vmatprep.subr.mxu0 0.0
    %1317 = vmatpush1.msra.mxu0 0.0
    %1318 = vmatprep.subr.mxu0 0.0
    %1319 = vmatpush1.msra.mxu0 0.0
    %1320 = vmatprep.subr.mxu0 0.0
    %1321 = vmatpush1.msra.mxu0 0.0
    %1322 = vmatprep.subr.mxu0 0.0
    %1323 = vmatpush1.msra.mxu0 0.0
    %1324 = vmatprep.subr.mxu0 0.0
    %1325 = vmatpush1.msra.mxu0 0.0
    %1326 = vmatprep.subr.mxu0 0.0
    %1327 = vmatpush1.msra.mxu0 0.0
    %1328 = vmatprep.subr.mxu0 0.0
    %1329 = vmatpush1.msra.mxu0 0.0
    %1330 = vmatprep.subr.mxu0 0.0
    %1331 = vmatpush1.msra.mxu0 0.0
    %1332 = vmatprep.subr.mxu0 0.0
    %1333 = vmatpush1.msra.mxu0 0.0
    %1334 = vmatprep.subr.mxu0 0.0
    %1335 = vmatpush1.msra.mxu0 0.0
    %1336 = vmatprep.subr.mxu0 0.0
    %1337 = vmatpush1.msra.mxu0 %v196
    %1338 = vmatprep.subr.mxu0 0.0
    %1339 = vmatpush1.msra.mxu0 %v195
    %1340 = vmatprep.subr.mxu0 0.0
    %1341 = vmatpush1.msra.mxu0 %v194
    %1342 = vmatprep.subr.mxu0 0.0
    %1343 = vmatpush1.msra.mxu0 %v193
    %1344 = vmatprep.subr.mxu0 0.0
    %1345 = vmatpush2.msra.mxu0 0.0
    %1346 = vmatprep.subr.mxu0 0.0
    %1347 = vmatpush2.msra.mxu0 0.0
    %1348 = vmatprep.subr.mxu0 0.0
    %1349 = vmatpush2.msra.mxu0 0.0
    %1350 = vmatprep.subr.mxu0 0.0
    %1351 = vmatpush2.msra.mxu0 0.0
    %1352 = vmatprep.subr.mxu0 0.0
    %1353 = vmatpush2.msra.mxu0 0.0
    %1354 = vmatprep.subr.mxu0 0.0
    %1355 = vmatpush2.msra.mxu0 0.0
    %1356 = vmatprep.subr.mxu0 0.0
    %1357 = vmatpush2.msra.mxu0 0.0
    %1358 = vmatprep.subr.mxu0 0.0
    %1359 = vmatpush2.msra.mxu0 0.0
    %1360 = vmatprep.subr.mxu0 0.0
    %1361 = vmatpush2.msra.mxu0 0.0
    %1362 = vmatprep.subr.mxu0 0.0
    %1363 = vmatpush2.msra.mxu0 0.0
    %1364 = vmatprep.subr.mxu0 0.0
    %1365 = vmatpush2.msra.mxu0 0.0
    %1366 = vmatprep.subr.mxu0 0.0
    %1367 = vmatpush2.msra.mxu0 0.0
    %1368 = vmatprep.subr.mxu0 0.0
    %1369 = vmatpush2.msra.mxu0 0.0
    %1370 = vmatprep.subr.mxu0 0.0
    %1371 = vmatpush2.msra.mxu0 0.0
    %1372 = vmatprep.subr.mxu0 0.0
    %1373 = vmatpush2.msra.mxu0 0.0
    %1374 = vmatprep.subr.mxu0 0.0
    %1375 = vmatpush2.msra.mxu0 0.0
    %1376 = vmatprep.mubr.f32.mxu0 0.0
    %1377 = vmatmul.mubr.f32.gmra.mxu0 %v1310
    %v1378 = vpop.f32.mrf.mxu0
    %v1379 = vadd.f32 %v278, %v1378
    %v1380 = vpop.f32.mrf.mxu0
    %1381 = vdwg.mxu0
    %1382 = vst.msk [vmem:[#allocation2 + $0x38] sm:$0xff] %vm180, %v1379
    %v1383 = vld [vmem:[%s5] sm:$0xff]
    %v1384 = vld [vmem:[%s5 + $0x8] sm:$0xff]
    %v1385 = vld [vmem:[%s5 + $0x10] sm:$0xff]
    %v1386 = vld [vmem:[%s5 + $0x18] sm:$0xff]
    %v1387 = vld [vmem:[#allocation2] sm:$0xff]
    %1388 = vmatprep.subr.mxu0 0.0
    %1389 = vmatpush1.msra.mxu0 0.0
    %1390 = vmatprep.subr.mxu0 0.0
    %1391 = vmatpush1.msra.mxu0 0.0
    %1392 = vmatprep.subr.mxu0 0.0
    %1393 = vmatpush1.msra.mxu0 0.0
    %1394 = vmatprep.subr.mxu0 0.0
    %1395 = vmatpush1.msra.mxu0 0.0
    %1396 = vmatprep.subr.mxu0 0.0
    %1397 = vmatpush1.msra.mxu0 0.0
    %1398 = vmatprep.subr.mxu0 0.0
    %1399 = vmatpush1.msra.mxu0 0.0
    %1400 = vmatprep.subr.mxu0 0.0
    %1401 = vmatpush1.msra.mxu0 0.0
    %1402 = vmatprep.subr.mxu0 0.0
    %1403 = vmatpush1.msra.mxu0 0.0
    %1404 = vmatprep.subr.mxu0 0.0
    %1405 = vmatpush1.msra.mxu0 0.0
    %1406 = vmatprep.subr.mxu0 0.0
    %1407 = vmatpush1.msra.mxu0 0.0
    %1408 = vmatprep.subr.mxu0 0.0
    %1409 = vmatpush1.msra.mxu0 0.0
    %1410 = vmatprep.subr.mxu0 0.0
    %1411 = vmatpush1.msra.mxu0 0.0
    %1412 = vmatprep.subr.mxu0 0.0
    %1413 = vmatpush1.msra.mxu0 %v1386
    %1414 = vmatprep.subr.mxu0 0.0
    %1415 = vmatpush1.msra.mxu0 %v1385
    %1416 = vmatprep.subr.mxu0 0.0
    %1417 = vmatpush1.msra.mxu0 %v1384
    %1418 = vmatprep.subr.mxu0 0.0
    %1419 = vmatpush1.msra.mxu0 %v1383
    %1420 = vmatprep.subr.mxu0 0.0
    %1421 = vmatpush2.msra.mxu0 0.0
    %1422 = vmatprep.subr.mxu0 0.0
    %1423 = vmatpush2.msra.mxu0 0.0
    %1424 = vmatprep.subr.mxu0 0.0
    %1425 = vmatpush2.msra.mxu0 0.0
    %1426 = vmatprep.subr.mxu0 0.0
    %1427 = vmatpush2.msra.mxu0 0.0
    %1428 = vmatprep.subr.mxu0 0.0
    %1429 = vmatpush2.msra.mxu0 0.0
    %1430 = vmatprep.subr.mxu0 0.0
    %1431 = vmatpush2.msra.mxu0 0.0
    %1432 = vmatprep.subr.mxu0 0.0
    %1433 = vmatpush2.msra.mxu0 0.0
    %1434 = vmatprep.subr.mxu0 0.0
    %1435 = vmatpush2.msra.mxu0 0.0
    %1436 = vmatprep.subr.mxu0 0.0
    %1437 = vmatpush2.msra.mxu0 0.0
    %1438 = vmatprep.subr.mxu0 0.0
    %1439 = vmatpush2.msra.mxu0 0.0
    %1440 = vmatprep.subr.mxu0 0.0
    %1441 = vmatpush2.msra.mxu0 0.0
    %1442 = vmatprep.subr.mxu0 0.0
    %1443 = vmatpush2.msra.mxu0 0.0
    %1444 = vmatprep.subr.mxu0 0.0
    %1445 = vmatpush2.msra.mxu0 0.0
    %1446 = vmatprep.subr.mxu0 0.0
    %1447 = vmatpush2.msra.mxu0 0.0
    %1448 = vmatprep.subr.mxu0 0.0
    %1449 = vmatpush2.msra.mxu0 0.0
    %1450 = vmatprep.subr.mxu0 0.0
    %1451 = vmatpush2.msra.mxu0 0.0
    %1452 = vmatprep.mubr.f32.mxu0 0.0
    %1453 = vmatmul.mubr.f32.gmra.mxu0 %v200
    %v1454 = vpop.f32.mrf.mxu0
    %v1455 = vadd.f32 0.0, %v1454
    %v1456 = vpop.f32.mrf.mxu0
    %1457 = vdwg.mxu0
    %v1458 = vadd.f32 %v1387, %v1455
    %v1459 = vmax.f32 %v1458, 0.0
    %v1460 = vld [vmem:[#allocation2 + $0x8] sm:$0xff]
    %v1462 = vsel %vm180, %v1459, 0
    %1464 = vmatprep.subr.mxu0 0.0
    %1465 = vmatpush1.msra.mxu0 0.0
    %1466 = vmatprep.subr.mxu0 0.0
    %1467 = vmatpush1.msra.mxu0 0.0
    %1468 = vmatprep.subr.mxu0 0.0
    %1469 = vmatpush1.msra.mxu0 0.0
    %1470 = vmatprep.subr.mxu0 0.0
    %1471 = vmatpush1.msra.mxu0 0.0
    %1472 = vmatprep.subr.mxu0 0.0
    %1473 = vmatpush1.msra.mxu0 0.0
    %1474 = vmatprep.subr.mxu0 0.0
    %1475 = vmatpush1.msra.mxu0 0.0
    %1476 = vmatprep.subr.mxu0 0.0
    %1477 = vmatpush1.msra.mxu0 0.0
    %1478 = vmatprep.subr.mxu0 0.0
    %1479 = vmatpush1.msra.mxu0 0.0
    %1480 = vmatprep.subr.mxu0 0.0
    %1481 = vmatpush1.msra.mxu0 0.0
    %1482 = vmatprep.subr.mxu0 0.0
    %1483 = vmatpush1.msra.mxu0 0.0
    %1484 = vmatprep.subr.mxu0 0.0
    %1485 = vmatpush1.msra.mxu0 0.0
    %1486 = vmatprep.subr.mxu0 0.0
    %1487 = vmatpush1.msra.mxu0 0.0
    %1488 = vmatprep.subr.mxu0 0.0
    %1489 = vmatpush1.msra.mxu0 %v1386
    %1490 = vmatprep.subr.mxu0 0.0
    %1491 = vmatpush1.msra.mxu0 %v1385
    %1492 = vmatprep.subr.mxu0 0.0
    %1493 = vmatpush1.msra.mxu0 %v1384
    %1494 = vmatprep.subr.mxu0 0.0
    %1495 = vmatpush1.msra.mxu0 %v1383
    %1496 = vmatprep.subr.mxu0 0.0
    %1497 = vmatpush2.msra.mxu0 0.0
    %1498 = vmatprep.subr.mxu0 0.0
    %1499 = vmatpush2.msra.mxu0 0.0
    %1500 = vmatprep.subr.mxu0 0.0
    %1501 = vmatpush2.msra.mxu0 0.0
    %1502 = vmatprep.subr.mxu0 0.0
    %1503 = vmatpush2.msra.mxu0 0.0
    %1504 = vmatprep.subr.mxu0 0.0
    %1505 = vmatpush2.msra.mxu0 0.0
    %1506 = vmatprep.subr.mxu0 0.0
    %1507 = vmatpush2.msra.mxu0 0.0
    %1508 = vmatprep.subr.mxu0 0.0
    %1509 = vmatpush2.msra.mxu0 0.0
    %1510 = vmatprep.subr.mxu0 0.0
    %1511 = vmatpush2.msra.mxu0 0.0
    %1512 = vmatprep.subr.mxu0 0.0
    %1513 = vmatpush2.msra.mxu0 0.0
    %1514 = vmatprep.subr.mxu0 0.0
    %1515 = vmatpush2.msra.mxu0 0.0
    %1516 = vmatprep.subr.mxu0 0.0
    %1517 = vmatpush2.msra.mxu0 0.0
    %1518 = vmatprep.subr.mxu0 0.0
    %1519 = vmatpush2.msra.mxu0 0.0
    %1520 = vmatprep.subr.mxu0 0.0
    %1521 = vmatpush2.msra.mxu0 0.0
    %1522 = vmatprep.subr.mxu0 0.0
    %1523 = vmatpush2.msra.mxu0 0.0
    %1524 = vmatprep.subr.mxu0 0.0
    %1525 = vmatpush2.msra.mxu0 0.0
    %1526 = vmatprep.subr.mxu0 0.0
    %1527 = vmatpush2.msra.mxu0 0.0
    %1528 = vmatprep.mubr.f32.mxu0 0.0
    %1529 = vmatmul.mubr.f32.gmra.mxu0 %v1462
    %v1530 = vpop.f32.mrf.mxu0
    %v1531 = vadd.f32 0.0, %v1530
    %v1532 = vpop.f32.mrf.mxu0
    %1533 = vdwg.mxu0
    %v1534 = vadd.f32 %v1460, %v1531
    %v1535 = vmax.f32 %v1534, 0.0
    %v1536 = vld [vmem:[#allocation2 + $0x10] sm:$0xff]
    %v1538 = vsel %vm180, %v1535, 0
    %1540 = vmatprep.subr.mxu0 0.0
    %1541 = vmatpush1.msra.mxu0 0.0
    %1542 = vmatprep.subr.mxu0 0.0
    %1543 = vmatpush1.msra.mxu0 0.0
    %1544 = vmatprep.subr.mxu0 0.0
    %1545 = vmatpush1.msra.mxu0 0.0
    %1546 = vmatprep.subr.mxu0 0.0
    %1547 = vmatpush1.msra.mxu0 0.0
    %1548 = vmatprep.subr.mxu0 0.0
    %1549 = vmatpush1.msra.mxu0 0.0
    %1550 = vmatprep.subr.mxu0 0.0
    %1551 = vmatpush1.msra.mxu0 0.0
    %1552 = vmatprep.subr.mxu0 0.0
    %1553 = vmatpush1.msra.mxu0 0.0
    %1554 = vmatprep.subr.mxu0 0.0
    %1555 = vmatpush1.msra.mxu0 0.0
    %1556 = vmatprep.subr.mxu0 0.0
    %1557 = vmatpush1.msra.mxu0 0.0
    %1558 = vmatprep.subr.mxu0 0.0
    %1559 = vmatpush1.msra.mxu0 0.0
    %1560 = vmatprep.subr.mxu0 0.0
    %1561 = vmatpush1.msra.mxu0 0.0
    %1562 = vmatprep.subr.mxu0 0.0
    %1563 = vmatpush1.msra.mxu0 0.0
    %1564 = vmatprep.subr.mxu0 0.0
    %1565 = vmatpush1.msra.mxu0 %v1386
    %1566 = vmatprep.subr.mxu0 0.0
    %1567 = vmatpush1.msra.mxu0 %v1385
    %1568 = vmatprep.subr.mxu0 0.0
    %1569 = vmatpush1.msra.mxu0 %v1384
    %1570 = vmatprep.subr.mxu0 0.0
    %1571 = vmatpush1.msra.mxu0 %v1383
    %1572 = vmatprep.subr.mxu0 0.0
    %1573 = vmatpush2.msra.mxu0 0.0
    %1574 = vmatprep.subr.mxu0 0.0
    %1575 = vmatpush2.msra.mxu0 0.0
    %1576 = vmatprep.subr.mxu0 0.0
    %1577 = vmatpush2.msra.mxu0 0.0
    %1578 = vmatprep.subr.mxu0 0.0
    %1579 = vmatpush2.msra.mxu0 0.0
    %1580 = vmatprep.subr.mxu0 0.0
    %1581 = vmatpush2.msra.mxu0 0.0
    %1582 = vmatprep.subr.mxu0 0.0
    %1583 = vmatpush2.msra.mxu0 0.0
    %1584 = vmatprep.subr.mxu0 0.0
    %1585 = vmatpush2.msra.mxu0 0.0
    %1586 = vmatprep.subr.mxu0 0.0
    %1587 = vmatpush2.msra.mxu0 0.0
    %1588 = vmatprep.subr.mxu0 0.0
    %1589 = vmatpush2.msra.mxu0 0.0
    %1590 = vmatprep.subr.mxu0 0.0
    %1591 = vmatpush2.msra.mxu0 0.0
    %1592 = vmatprep.subr.mxu0 0.0
    %1593 = vmatpush2.msra.mxu0 0.0
    %1594 = vmatprep.subr.mxu0 0.0
    %1595 = vmatpush2.msra.mxu0 0.0
    %1596 = vmatprep.subr.mxu0 0.0
    %1597 = vmatpush2.msra.mxu0 0.0
    %1598 = vmatprep.subr.mxu0 0.0
    %1599 = vmatpush2.msra.mxu0 0.0
    %1600 = vmatprep.subr.mxu0 0.0
    %1601 = vmatpush2.msra.mxu0 0.0
    %1602 = vmatprep.subr.mxu0 0.0
    %1603 = vmatpush2.msra.mxu0 0.0
    %1604 = vmatprep.mubr.f32.mxu0 0.0
    %1605 = vmatmul.mubr.f32.gmra.mxu0 %v1538
    %v1606 = vpop.f32.mrf.mxu0
    %v1607 = vadd.f32 0.0, %v1606
    %v1608 = vpop.f32.mrf.mxu0
    %1609 = vdwg.mxu0
    %v1610 = vadd.f32 %v1536, %v1607
    %v1611 = vmax.f32 %v1610, 0.0
    %v1612 = vld [vmem:[#allocation2 + $0x18] sm:$0xff]
    %v1614 = vsel %vm180, %v1611, 0
    %1616 = vmatprep.subr.mxu0 0.0
    %1617 = vmatpush1.msra.mxu0 0.0
    %1618 = vmatprep.subr.mxu0 0.0
    %1619 = vmatpush1.msra.mxu0 0.0
    %1620 = vmatprep.subr.mxu0 0.0
    %1621 = vmatpush1.msra.mxu0 0.0
    %1622 = vmatprep.subr.mxu0 0.0
    %1623 = vmatpush1.msra.mxu0 0.0
    %1624 = vmatprep.subr.mxu0 0.0
    %1625 = vmatpush1.msra.mxu0 0.0
    %1626 = vmatprep.subr.mxu0 0.0
    %1627 = vmatpush1.msra.mxu0 0.0
    %1628 = vmatprep.subr.mxu0 0.0
    %1629 = vmatpush1.msra.mxu0 0.0
    %1630 = vmatprep.subr.mxu0 0.0
    %1631 = vmatpush1.msra.mxu0 0.0
    %1632 = vmatprep.subr.mxu0 0.0
    %1633 = vmatpush1.msra.mxu0 0.0
    %1634 = vmatprep.subr.mxu0 0.0
    %1635 = vmatpush1.msra.mxu0 0.0
    %1636 = vmatprep.subr.mxu0 0.0
    %1637 = vmatpush1.msra.mxu0 0.0
    %1638 = vmatprep.subr.mxu0 0.0
    %1639 = vmatpush1.msra.mxu0 0.0
    %1640 = vmatprep.subr.mxu0 0.0
    %1641 = vmatpush1.msra.mxu0 %v1386
    %1642 = vmatprep.subr.mxu0 0.0
    %1643 = vmatpush1.msra.mxu0 %v1385
    %1644 = vmatprep.subr.mxu0 0.0
    %1645 = vmatpush1.msra.mxu0 %v1384
    %1646 = vmatprep.subr.mxu0 0.0
    %1647 = vmatpush1.msra.mxu0 %v1383
    %1648 = vmatprep.subr.mxu0 0.0
    %1649 = vmatpush2.msra.mxu0 0.0
    %1650 = vmatprep.subr.mxu0 0.0
    %1651 = vmatpush2.msra.mxu0 0.0
    %1652 = vmatprep.subr.mxu0 0.0
    %1653 = vmatpush2.msra.mxu0 0.0
    %1654 = vmatprep.subr.mxu0 0.0
    %1655 = vmatpush2.msra.mxu0 0.0
    %1656 = vmatprep.subr.mxu0 0.0
    %1657 = vmatpush2.msra.mxu0 0.0
    %1658 = vmatprep.subr.mxu0 0.0
    %1659 = vmatpush2.msra.mxu0 0.0
    %1660 = vmatprep.subr.mxu0 0.0
    %1661 = vmatpush2.msra.mxu0 0.0
    %1662 = vmatprep.subr.mxu0 0.0
    %1663 = vmatpush2.msra.mxu0 0.0
    %1664 = vmatprep.subr.mxu0 0.0
    %1665 = vmatpush2.msra.mxu0 0.0
    %1666 = vmatprep.subr.mxu0 0.0
    %1667 = vmatpush2.msra.mxu0 0.0
    %1668 = vmatprep.subr.mxu0 0.0
    %1669 = vmatpush2.msra.mxu0 0.0
    %1670 = vmatprep.subr.mxu0 0.0
    %1671 = vmatpush2.msra.mxu0 0.0
    %1672 = vmatprep.subr.mxu0 0.0
    %1673 = vmatpush2.msra.mxu0 0.0
    %1674 = vmatprep.subr.mxu0 0.0
    %1675 = vmatpush2.msra.mxu0 0.0
    %1676 = vmatprep.subr.mxu0 0.0
    %1677 = vmatpush2.msra.mxu0 0.0
    %1678 = vmatprep.subr.mxu0 0.0
    %1679 = vmatpush2.msra.mxu0 0.0
    %1680 = vmatprep.mubr.f32.mxu0 0.0
    %1681 = vmatmul.mubr.f32.gmra.mxu0 %v1614
    %v1682 = vpop.f32.mrf.mxu0
    %v1683 = vadd.f32 0.0, %v1682
    %v1684 = vpop.f32.mrf.mxu0
    %1685 = vdwg.mxu0
    %v1686 = vadd.f32 %v1612, %v1683
    %v1687 = vmax.f32 %v1686, 0.0
    %v1688 = vld [vmem:[#allocation2 + $0x20] sm:$0xff]
    %v1690 = vsel %vm180, %v1687, 0
    %1692 = vmatprep.subr.mxu0 0.0
    %1693 = vmatpush1.msra.mxu0 0.0
    %1694 = vmatprep.subr.mxu0 0.0
    %1695 = vmatpush1.msra.mxu0 0.0
    %1696 = vmatprep.subr.mxu0 0.0
    %1697 = vmatpush1.msra.mxu0 0.0
    %1698 = vmatprep.subr.mxu0 0.0
    %1699 = vmatpush1.msra.mxu0 0.0
    %1700 = vmatprep.subr.mxu0 0.0
    %1701 = vmatpush1.msra.mxu0 0.0
    %1702 = vmatprep.subr.mxu0 0.0
    %1703 = vmatpush1.msra.mxu0 0.0
    %1704 = vmatprep.subr.mxu0 0.0
    %1705 = vmatpush1.msra.mxu0 0.0
    %1706 = vmatprep.subr.mxu0 0.0
    %1707 = vmatpush1.msra.mxu0 0.0
    %1708 = vmatprep.subr.mxu0 0.0
    %1709 = vmatpush1.msra.mxu0 0.0
    %1710 = vmatprep.subr.mxu0 0.0
    %1711 = vmatpush1.msra.mxu0 0.0
    %1712 = vmatprep.subr.mxu0 0.0
    %1713 = vmatpush1.msra.mxu0 0.0
    %1714 = vmatprep.subr.mxu0 0.0
    %1715 = vmatpush1.msra.mxu0 0.0
    %1716 = vmatprep.subr.mxu0 0.0
    %1717 = vmatpush1.msra.mxu0 %v1386
    %1718 = vmatprep.subr.mxu0 0.0
    %1719 = vmatpush1.msra.mxu0 %v1385
    %1720 = vmatprep.subr.mxu0 0.0
    %1721 = vmatpush1.msra.mxu0 %v1384
    %1722 = vmatprep.subr.mxu0 0.0
    %1723 = vmatpush1.msra.mxu0 %v1383
    %1724 = vmatprep.subr.mxu0 0.0
    %1725 = vmatpush2.msra.mxu0 0.0
    %1726 = vmatprep.subr.mxu0 0.0
    %1727 = vmatpush2.msra.mxu0 0.0
    %1728 = vmatprep.subr.mxu0 0.0
    %1729 = vmatpush2.msra.mxu0 0.0
    %1730 = vmatprep.subr.mxu0 0.0
    %1731 = vmatpush2.msra.mxu0 0.0
    %1732 = vmatprep.subr.mxu0 0.0
    %1733 = vmatpush2.msra.mxu0 0.0
    %1734 = vmatprep.subr.mxu0 0.0
    %1735 = vmatpush2.msra.mxu0 0.0
    %1736 = vmatprep.subr.mxu0 0.0
    %1737 = vmatpush2.msra.mxu0 0.0
    %1738 = vmatprep.subr.mxu0 0.0
    %1739 = vmatpush2.msra.mxu0 0.0
    %1740 = vmatprep.subr.mxu0 0.0
    %1741 = vmatpush2.msra.mxu0 0.0
    %1742 = vmatprep.subr.mxu0 0.0
    %1743 = vmatpush2.msra.mxu0 0.0
    %1744 = vmatprep.subr.mxu0 0.0
    %1745 = vmatpush2.msra.mxu0 0.0
    %1746 = vmatprep.subr.mxu0 0.0
    %1747 = vmatpush2.msra.mxu0 0.0
    %1748 = vmatprep.subr.mxu0 0.0
    %1749 = vmatpush2.msra.mxu0 0.0
    %1750 = vmatprep.subr.mxu0 0.0
    %1751 = vmatpush2.msra.mxu0 0.0
    %1752 = vmatprep.subr.mxu0 0.0
    %1753 = vmatpush2.msra.mxu0 0.0
    %1754 = vmatprep.subr.mxu0 0.0
    %1755 = vmatpush2.msra.mxu0 0.0
    %1756 = vmatprep.mubr.f32.mxu0 0.0
    %1757 = vmatmul.mubr.f32.gmra.mxu0 %v1690
    %v1758 = vpop.f32.mrf.mxu0
    %v1759 = vadd.f32 0.0, %v1758
    %v1760 = vpop.f32.mrf.mxu0
    %1761 = vdwg.mxu0
    %v1762 = vadd.f32 %v1688, %v1759
    %v1763 = vmax.f32 %v1762, 0.0
    %v1764 = vld [vmem:[#allocation2 + $0x28] sm:$0xff]
    %v1766 = vsel %vm180, %v1763, 0
    %1768 = vmatprep.subr.mxu0 0.0
    %1769 = vmatpush1.msra.mxu0 0.0
    %1770 = vmatprep.subr.mxu0 0.0
    %1771 = vmatpush1.msra.mxu0 0.0
    %1772 = vmatprep.subr.mxu0 0.0
    %1773 = vmatpush1.msra.mxu0 0.0
    %1774 = vmatprep.subr.mxu0 0.0
    %1775 = vmatpush1.msra.mxu0 0.0
    %1776 = vmatprep.subr.mxu0 0.0
    %1777 = vmatpush1.msra.mxu0 0.0
    %1778 = vmatprep.subr.mxu0 0.0
    %1779 = vmatpush1.msra.mxu0 0.0
    %1780 = vmatprep.subr.mxu0 0.0
    %1781 = vmatpush1.msra.mxu0 0.0
    %1782 = vmatprep.subr.mxu0 0.0
    %1783 = vmatpush1.msra.mxu0 0.0
    %1784 = vmatprep.subr.mxu0 0.0
    %1785 = vmatpush1.msra.mxu0 0.0
    %1786 = vmatprep.subr.mxu0 0.0
    %1787 = vmatpush1.msra.mxu0 0.0
    %1788 = vmatprep.subr.mxu0 0.0
    %1789 = vmatpush1.msra.mxu0 0.0
    %1790 = vmatprep.subr.mxu0 0.0
    %1791 = vmatpush1.msra.mxu0 0.0
    %1792 = vmatprep.subr.mxu0 0.0
    %1793 = vmatpush1.msra.mxu0 %v1386
    %1794 = vmatprep.subr.mxu0 0.0
    %1795 = vmatpush1.msra.mxu0 %v1385
    %1796 = vmatprep.subr.mxu0 0.0
    %1797 = vmatpush1.msra.mxu0 %v1384
    %1798 = vmatprep.subr.mxu0 0.0
    %1799 = vmatpush1.msra.mxu0 %v1383
    %1800 = vmatprep.subr.mxu0 0.0
    %1801 = vmatpush2.msra.mxu0 0.0
    %1802 = vmatprep.subr.mxu0 0.0
    %1803 = vmatpush2.msra.mxu0 0.0
    %1804 = vmatprep.subr.mxu0 0.0
    %1805 = vmatpush2.msra.mxu0 0.0
    %1806 = vmatprep.subr.mxu0 0.0
    %1807 = vmatpush2.msra.mxu0 0.0
    %1808 = vmatprep.subr.mxu0 0.0
    %1809 = vmatpush2.msra.mxu0 0.0
    %1810 = vmatprep.subr.mxu0 0.0
    %1811 = vmatpush2.msra.mxu0 0.0
    %1812 = vmatprep.subr.mxu0 0.0
    %1813 = vmatpush2.msra.mxu0 0.0
    %1814 = vmatprep.subr.mxu0 0.0
    %1815 = vmatpush2.msra.mxu0 0.0
    %1816 = vmatprep.subr.mxu0 0.0
    %1817 = vmatpush2.msra.mxu0 0.0
    %1818 = vmatprep.subr.mxu0 0.0
    %1819 = vmatpush2.msra.mxu0 0.0
    %1820 = vmatprep.subr.mxu0 0.0
    %1821 = vmatpush2.msra.mxu0 0.0
    %1822 = vmatprep.subr.mxu0 0.0
    %1823 = vmatpush2.msra.mxu0 0.0
    %1824 = vmatprep.subr.mxu0 0.0
    %1825 = vmatpush2.msra.mxu0 0.0
    %1826 = vmatprep.subr.mxu0 0.0
    %1827 = vmatpush2.msra.mxu0 0.0
    %1828 = vmatprep.subr.mxu0 0.0
    %1829 = vmatpush2.msra.mxu0 0.0
    %1830 = vmatprep.subr.mxu0 0.0
    %1831 = vmatpush2.msra.mxu0 0.0
    %1832 = vmatprep.mubr.f32.mxu0 0.0
    %1833 = vmatmul.mubr.f32.gmra.mxu0 %v1766
    %v1834 = vpop.f32.mrf.mxu0
    %v1835 = vadd.f32 0.0, %v1834
    %v1836 = vpop.f32.mrf.mxu0
    %1837 = vdwg.mxu0
    %v1838 = vadd.f32 %v1764, %v1835
    %v1839 = vmax.f32 %v1838, 0.0
    %v1840 = vld [vmem:[#allocation2 + $0x30] sm:$0xff]
    %v1842 = vsel %vm180, %v1839, 0
    %1844 = vmatprep.subr.mxu0 0.0
    %1845 = vmatpush1.msra.mxu0 0.0
    %1846 = vmatprep.subr.mxu0 0.0
    %1847 = vmatpush1.msra.mxu0 0.0
    %1848 = vmatprep.subr.mxu0 0.0
    %1849 = vmatpush1.msra.mxu0 0.0
    %1850 = vmatprep.subr.mxu0 0.0
    %1851 = vmatpush1.msra.mxu0 0.0
    %1852 = vmatprep.subr.mxu0 0.0
    %1853 = vmatpush1.msra.mxu0 0.0
    %1854 = vmatprep.subr.mxu0 0.0
    %1855 = vmatpush1.msra.mxu0 0.0
    %1856 = vmatprep.subr.mxu0 0.0
    %1857 = vmatpush1.msra.mxu0 0.0
    %1858 = vmatprep.subr.mxu0 0.0
    %1859 = vmatpush1.msra.mxu0 0.0
    %1860 = vmatprep.subr.mxu0 0.0
    %1861 = vmatpush1.msra.mxu0 0.0
    %1862 = vmatprep.subr.mxu0 0.0
    %1863 = vmatpush1.msra.mxu0 0.0
    %1864 = vmatprep.subr.mxu0 0.0
    %1865 = vmatpush1.msra.mxu0 0.0
    %1866 = vmatprep.subr.mxu0 0.0
    %1867 = vmatpush1.msra.mxu0 0.0
    %1868 = vmatprep.subr.mxu0 0.0
    %1869 = vmatpush1.msra.mxu0 %v1386
    %1870 = vmatprep.subr.mxu0 0.0
    %1871 = vmatpush1.msra.mxu0 %v1385
    %1872 = vmatprep.subr.mxu0 0.0
    %1873 = vmatpush1.msra.mxu0 %v1384
    %1874 = vmatprep.subr.mxu0 0.0
    %1875 = vmatpush1.msra.mxu0 %v1383
    %1876 = vmatprep.subr.mxu0 0.0
    %1877 = vmatpush2.msra.mxu0 0.0
    %1878 = vmatprep.subr.mxu0 0.0
    %1879 = vmatpush2.msra.mxu0 0.0
    %1880 = vmatprep.subr.mxu0 0.0
    %1881 = vmatpush2.msra.mxu0 0.0
    %1882 = vmatprep.subr.mxu0 0.0
    %1883 = vmatpush2.msra.mxu0 0.0
    %1884 = vmatprep.subr.mxu0 0.0
    %1885 = vmatpush2.msra.mxu0 0.0
    %1886 = vmatprep.subr.mxu0 0.0
    %1887 = vmatpush2.msra.mxu0 0.0
    %1888 = vmatprep.subr.mxu0 0.0
    %1889 = vmatpush2.msra.mxu0 0.0
    %1890 = vmatprep.subr.mxu0 0.0
    %1891 = vmatpush2.msra.mxu0 0.0
    %1892 = vmatprep.subr.mxu0 0.0
    %1893 = vmatpush2.msra.mxu0 0.0
    %1894 = vmatprep.subr.mxu0 0.0
    %1895 = vmatpush2.msra.mxu0 0.0
    %1896 = vmatprep.subr.mxu0 0.0
    %1897 = vmatpush2.msra.mxu0 0.0
    %1898 = vmatprep.subr.mxu0 0.0
    %1899 = vmatpush2.msra.mxu0 0.0
    %1900 = vmatprep.subr.mxu0 0.0
    %1901 = vmatpush2.msra.mxu0 0.0
    %1902 = vmatprep.subr.mxu0 0.0
    %1903 = vmatpush2.msra.mxu0 0.0
    %1904 = vmatprep.subr.mxu0 0.0
    %1905 = vmatpush2.msra.mxu0 0.0
    %1906 = vmatprep.subr.mxu0 0.0
    %1907 = vmatpush2.msra.mxu0 0.0
    %1908 = vmatprep.mubr.f32.mxu0 0.0
    %1909 = vmatmul.mubr.f32.gmra.mxu0 %v1842
    %v1910 = vpop.f32.mrf.mxu0
    %v1911 = vadd.f32 0.0, %v1910
    %v1912 = vpop.f32.mrf.mxu0
    %1913 = vdwg.mxu0
    %v1914 = vadd.f32 %v1840, %v1911
    %v1915 = vmax.f32 %v1914, 0.0
    %v1916 = vld [vmem:[#allocation2 + $0x38] sm:$0xff]
    %v1918 = vsel %vm180, %v1915, 0
    %1920 = vmatprep.subr.mxu0 0.0
    %1921 = vmatpush1.msra.mxu0 0.0
    %1922 = vmatprep.subr.mxu0 0.0
    %1923 = vmatpush1.msra.mxu0 0.0
    %1924 = vmatprep.subr.mxu0 0.0
    %1925 = vmatpush1.msra.mxu0 0.0
    %1926 = vmatprep.subr.mxu0 0.0
    %1927 = vmatpush1.msra.mxu0 0.0
    %1928 = vmatprep.subr.mxu0 0.0
    %1929 = vmatpush1.msra.mxu0 0.0
    %1930 = vmatprep.subr.mxu0 0.0
    %1931 = vmatpush1.msra.mxu0 0.0
    %1932 = vmatprep.subr.mxu0 0.0
    %1933 = vmatpush1.msra.mxu0 0.0
    %1934 = vmatprep.subr.mxu0 0.0
    %1935 = vmatpush1.msra.mxu0 0.0
    %1936 = vmatprep.subr.mxu0 0.0
    %1937 = vmatpush1.msra.mxu0 0.0
    %1938 = vmatprep.subr.mxu0 0.0
    %1939 = vmatpush1.msra.mxu0 0.0
    %1940 = vmatprep.subr.mxu0 0.0
    %1941 = vmatpush1.msra.mxu0 0.0
    %1942 = vmatprep.subr.mxu0 0.0
    %1943 = vmatpush1.msra.mxu0 0.0
    %1944 = vmatprep.subr.mxu0 0.0
    %1945 = vmatpush1.msra.mxu0 %v1386
    %1946 = vmatprep.subr.mxu0 0.0
    %1947 = vmatpush1.msra.mxu0 %v1385
    %1948 = vmatprep.subr.mxu0 0.0
    %1949 = vmatpush1.msra.mxu0 %v1384
    %1950 = vmatprep.subr.mxu0 0.0
    %1951 = vmatpush1.msra.mxu0 %v1383
    %1952 = vmatprep.subr.mxu0 0.0
    %1953 = vmatpush2.msra.mxu0 0.0
    %1954 = vmatprep.subr.mxu0 0.0
    %1955 = vmatpush2.msra.mxu0 0.0
    %1956 = vmatprep.subr.mxu0 0.0
    %1957 = vmatpush2.msra.mxu0 0.0
    %1958 = vmatprep.subr.mxu0 0.0
    %1959 = vmatpush2.msra.mxu0 0.0
    %1960 = vmatprep.subr.mxu0 0.0
    %1961 = vmatpush2.msra.mxu0 0.0
    %1962 = vmatprep.subr.mxu0 0.0
    %1963 = vmatpush2.msra.mxu0 0.0
    %1964 = vmatprep.subr.mxu0 0.0
    %1965 = vmatpush2.msra.mxu0 0.0
    %1966 = vmatprep.subr.mxu0 0.0
    %1967 = vmatpush2.msra.mxu0 0.0
    %1968 = vmatprep.subr.mxu0 0.0
    %1969 = vmatpush2.msra.mxu0 0.0
    %1970 = vmatprep.subr.mxu0 0.0
    %1971 = vmatpush2.msra.mxu0 0.0
    %1972 = vmatprep.subr.mxu0 0.0
    %1973 = vmatpush2.msra.mxu0 0.0
    %1974 = vmatprep.subr.mxu0 0.0
    %1975 = vmatpush2.msra.mxu0 0.0
    %1976 = vmatprep.subr.mxu0 0.0
    %1977 = vmatpush2.msra.mxu0 0.0
    %1978 = vmatprep.subr.mxu0 0.0
    %1979 = vmatpush2.msra.mxu0 0.0
    %1980 = vmatprep.subr.mxu0 0.0
    %1981 = vmatpush2.msra.mxu0 0.0
    %1982 = vmatprep.subr.mxu0 0.0
    %1983 = vmatpush2.msra.mxu0 0.0
    %1984 = vmatprep.mubr.f32.mxu0 0.0
    %1985 = vmatmul.mubr.f32.gmra.mxu0 %v1918
    %v1986 = vpop.f32.mrf.mxu0
    %v1987 = vadd.f32 0.0, %v1986
    %v1988 = vpop.f32.mrf.mxu0
    %1989 = vdwg.mxu0
    %v1990 = vadd.f32 %v1916, %v1987
    %v1991 = vmax.f32 %v1990, 0.0
    %v1992 = vld [vmem:[%s7] sm:$0xff]
    %v1993 = vld [vmem:[%s7 + $0x8] sm:$0xff]
    %v1994 = vld [vmem:[%s7 + $0x10] sm:$0xff]
    %v1995 = vld [vmem:[%s7 + $0x18] sm:$0xff]
    %v1996 = vld [vmem:[%s8] sm:$0x1]
    %v1998 = vlaneseq
    %v1999 = vshrl.u32 %v1998, 7
    %v2000 = vsub.s32 0, %v1999
    %v2001 = vrot.slane %v1996, %v2000
    %v2004 = vsel %vm180, %v1991, 0
    %2006 = vmatprep.subr.mxu0 0.0
    %2007 = vmatpush1.msra.mxu0 0.0
    %2008 = vmatprep.subr.mxu0 0.0
    %2009 = vmatpush1.msra.mxu0 0.0
    %2010 = vmatprep.subr.mxu0 0.0
    %2011 = vmatpush1.msra.mxu0 0.0
    %2012 = vmatprep.subr.mxu0 0.0
    %2013 = vmatpush1.msra.mxu0 0.0
    %2014 = vmatprep.subr.mxu0 0.0
    %2015 = vmatpush1.msra.mxu0 0.0
    %2016 = vmatprep.subr.mxu0 0.0
    %2017 = vmatpush1.msra.mxu0 0.0
    %2018 = vmatprep.subr.mxu0 0.0
    %2019 = vmatpush1.msra.mxu0 0.0
    %2020 = vmatprep.subr.mxu0 0.0
    %2021 = vmatpush1.msra.mxu0 0.0
    %2022 = vmatprep.subr.mxu0 0.0
    %2023 = vmatpush1.msra.mxu0 0.0
    %2024 = vmatprep.subr.mxu0 0.0
    %2025 = vmatpush1.msra.mxu0 0.0
    %2026 = vmatprep.subr.mxu0 0.0
    %2027 = vmatpush1.msra.mxu0 0.0
    %2028 = vmatprep.subr.mxu0 0.0
    %2029 = vmatpush1.msra.mxu0 0.0
    %2030 = vmatprep.subr.mxu0 0.0
    %2031 = vmatpush1.msra.mxu0 %v1995
    %2032 = vmatprep.subr.mxu0 0.0
    %2033 = vmatpush1.msra.mxu0 %v1994
    %2034 = vmatprep.subr.mxu0 0.0
    %2035 = vmatpush1.msra.mxu0 %v1993
    %2036 = vmatprep.subr.mxu0 0.0
    %2037 = vmatpush1.msra.mxu0 %v1992
    %2038 = vmatprep.subr.mxu0 0.0
    %2039 = vmatpush2.msra.mxu0 0.0
    %2040 = vmatprep.subr.mxu0 0.0
    %2041 = vmatpush2.msra.mxu0 0.0
    %2042 = vmatprep.subr.mxu0 0.0
    %2043 = vmatpush2.msra.mxu0 0.0
    %2044 = vmatprep.subr.mxu0 0.0
    %2045 = vmatpush2.msra.mxu0 0.0
    %2046 = vmatprep.subr.mxu0 0.0
    %2047 = vmatpush2.msra.mxu0 0.0
    %2048 = vmatprep.subr.mxu0 0.0
    %2049 = vmatpush2.msra.mxu0 0.0
    %2050 = vmatprep.subr.mxu0 0.0
    %2051 = vmatpush2.msra.mxu0 0.0
    %2052 = vmatprep.subr.mxu0 0.0
    %2053 = vmatpush2.msra.mxu0 0.0
    %2054 = vmatprep.subr.mxu0 0.0
    %2055 = vmatpush2.msra.mxu0 0.0
    %2056 = vmatprep.subr.mxu0 0.0
    %2057 = vmatpush2.msra.mxu0 0.0
    %2058 = vmatprep.subr.mxu0 0.0
    %2059 = vmatpush2.msra.mxu0 0.0
    %2060 = vmatprep.subr.mxu0 0.0
    %2061 = vmatpush2.msra.mxu0 0.0
    %2062 = vmatprep.subr.mxu0 0.0
    %2063 = vmatpush2.msra.mxu0 0.0
    %2064 = vmatprep.subr.mxu0 0.0
    %2065 = vmatpush2.msra.mxu0 0.0
    %2066 = vmatprep.subr.mxu0 0.0
    %2067 = vmatpush2.msra.mxu0 0.0
    %2068 = vmatprep.subr.mxu0 0.0
    %2069 = vmatpush2.msra.mxu0 0.0
    %2070 = vmatprep.mubr.f32.mxu0 0.0
    %2071 = vmatmul.mubr.f32.gmra.mxu0 %v2004
    %v2072 = vpop.f32.mrf.mxu0
    %v2073 = vadd.f32 %v2001, %v2072
    %v2074 = vpop.f32.mrf.mxu0
    %2075 = vdwg.mxu0
    %vm2076 = vcmask 80896
    %2077 = vst.msk [vmem:[#allocation3] sm:$0xff] %vm2076, %v2073
    // Predicated region
    $region38: #{rnn_model_img_forward.1} parent=1 // pred_check
      _
    $region39: #{rnn_model_img_forward.1} parent=1 // pred_check_branch
      %2079 = sbr.rel (0) target = $region41
    $region40: #{rnn_model_img_forward.1} parent=1 // pred_region
      %s2081 = ssub.s32 128, 128
      %2082 = vsyncadd [#allocation4], %s2081
      %s2084 = sshll.u32 [#allocation3], 4
      %s2085 = int_to_ptr.vmem [resolvable:$true] %s2084
      %2087 = dma.vmem_to_hbm [thread:$0]  %s2085, 128, %s9, [#allocation4]
    $region41: #{rnn_model_img_forward.1} parent=1 // pred_fallthru
      _
    // Predicated region
    $region42: #{rnn_model_img_forward.1} parent=1 // pred_check
      _
    $region43: #{rnn_model_img_forward.1} parent=1 // pred_check_branch
      %2089 = sbr.rel (0) target = $region45
    $region44: #{rnn_model_img_forward.1} parent=1 // pred_region
      %2090 = dma.done [#allocation4], 128
    $region45: #{rnn_model_img_forward.1} parent=1 // pred_fallthru
      _
    %2091 = vsyncpa [#allocation4], 1

</llo_original>
